<compile_context>
chip_gen: v5e
topology: v5e:2x2
jax: 0.10.0
libtpu: 0.0.40
codegen_flags: <defaults>
</compile_context>

<pallas_src>
import jax
import jax.numpy as jnp
import numpy as np
from jax import lax
from jax.experimental import pallas as pl
from jax.experimental.pallas import tpu as pltpu


# ----------------------------- Pallas kernel -------------------------------

def fused_att_lstm_kernel(x_ref, wih0_ref, whh0_ref, b0_ref,
                          wih1_ref, whh1_ref, b1_ref,
                          wln_ref, bln_ref, wend_ref, bend_ref,
                          out_ref,
                          g_scr, y_scr):
    """Fused 2-layer LSTM + Ln/attention gate + (endconv ∘ end1) head.

    x_ref   : (T*M, C)  f32   time-major flattened input rows, M = B*num_nodes
    wih0    : (C, 4H)   bf16  ; whh0/wih1/whh1 : (H, 4H) bf16 (gate order i,f,g,o)
    b0/b1   : (1, 4H)   f32   (bias_ih + bias_hh folded)
    wln     : (H, H)    bf16  ; bln : (1, H) f32
    wend    : (T, H, OT*3) bf16  endconv weight with end1 folded in
    bend    : (1, OT*3) f32      endconv bias  with end1 folded in
    out_ref : (M, OT*3) f32
    g_scr   : (T*M, 4H) f32   hoisted per-timestep gate inputs (reused per layer)
    y_scr   : (T*M, H)  f32   per-layer hidden-state history   (reused per layer)
    """
    TM = x_ref.shape[0]
    H = whh0_ref.shape[0]
    M = out_ref.shape[0]
    T = TM // M
    f32 = jnp.float32
    bf16 = jnp.bfloat16

    def mm(a, b):  # bf16 MXU operands, fp32 accumulation
        return jnp.dot(a.astype(bf16), b, preferred_element_type=f32)

    def run_layer(whh):
        """Serial recurrence: only h @ Whh per step is on the critical path;
        the input projection (incl. bias) is already in g_scr."""
        def step(t, carry):
            h, c = carry
            row = pl.multiple_of(t * M, M)
            gates = g_scr[pl.ds(row, M), :] + mm(h, whh)
            i_g = jax.nn.sigmoid(gates[:, 0 * H:1 * H])
            f_g = jax.nn.sigmoid(gates[:, 1 * H:2 * H])
            g_g = jnp.tanh(gates[:, 2 * H:3 * H])
            o_g = jax.nn.sigmoid(gates[:, 3 * H:4 * H])
            c_new = f_g * c + i_g * g_g
            h_new = o_g * jnp.tanh(c_new)          # h/c state kept in fp32
            y_scr[pl.ds(row, M), :] = h_new
            return h_new, c_new

        zeros = jnp.zeros((M, H), f32)
        lax.fori_loop(0, T, step, (zeros, zeros), unroll=True)

    # ---- layer 0: hoisted input projection (one batched matmul) + recurrence
    g_scr[...] = mm(x_ref[...], wih0_ref[...]) + b0_ref[...]
    run_layer(whh0_ref[...])

    # ---- layer 1: hoisted input projection over all layer-0 outputs
    g_scr[...] = mm(y_scr[...], wih1_ref[...]) + b1_ref[...]
    run_layer(whh1_ref[...])

    # ---- Ln (Linear + ReLU) and the y * tanh(y) attention gate, all steps at once
    z = mm(y_scr[...], wln_ref[...]) + bln_ref[...]
    z = jnp.maximum(z, 0.0)
    gated = z * jnp.tanh(z)                         # (T*M, H), fp32

    # ---- head: endconv (T*H -> OT) with end1 (1 -> 3) folded -> one store
    acc = mm(gated[0:M, :], wend_ref[0])
    for t in range(1, T):                           # T is small & static
        acc = acc + mm(gated[t * M:(t + 1) * M, :], wend_ref[t])
    out_ref[...] = acc + bend_ref[...]


# ----------------------------- wrappers -------------------------------------

def _vmem():
    return pl.BlockSpec(memory_space=pltpu.MemorySpace.VMEM)


def prepare_params(raw, T, H):
    """Cast MXU operands to bf16 and fold end1 (Linear 1->3) into endconv.

    final[m, ot, k] = (z @ wend[:, ot] + bend[ot]) * w1[k] + b1e[k]
                    =  z @ (wend[:, ot] * w1[k]) + (bend[ot] * w1[k] + b1e[k])
    """
    bf16 = jnp.bfloat16
    wend, bend = raw["wend"], raw["bend"]            # (T*H, OT), (1, OT)
    w1, b1e = raw["w1"], raw["b1e"]                  # (3,), (3,)
    OT = wend.shape[1]
    wend_f = (wend[:, :, None] * w1[None, None, :]).reshape(T, H, OT * 3)
    bend_f = (bend[0][:, None] * w1[None, :] + b1e[None, :]).reshape(1, OT * 3)
    return {
        "wih0": raw["wih0"].astype(bf16), "whh0": raw["whh0"].astype(bf16),
        "b0": raw["b0"],
        "wih1": raw["wih1"].astype(bf16), "whh1": raw["whh1"].astype(bf16),
        "b1": raw["b1"],
        "wln": raw["wln"].astype(bf16), "bln": raw["bln"],
        "wend_f": wend_f.astype(bf16), "bend_f": bend_f,
    }


def att_lstm_forward(x, params, in_channels):
    """x: (B, N, T, F) -> (B, N, output_time_len, 3)  (matches PyTorch)."""
    B, N, T, _ = x.shape
    H = params["whh0"].shape[0]
    OT3 = params["wend_f"].shape[-1]
    M = B * N

    # glue: slice features, flatten (B, N), go time-major (tiny (M,T,C) op);
    # every large intermediate now lives inside the single fused kernel.
    xs = x[..., :in_channels].reshape(M, T, in_channels)
    x_tm = jnp.transpose(xs, (1, 0, 2)).reshape(T * M, in_channels)

    out = pl.pallas_call(
        fused_att_lstm_kernel,
        out_shape=jax.ShapeDtypeStruct((M, OT3), jnp.float32),
        in_specs=[_vmem()] * 11,
        out_specs=_vmem(),
        scratch_shapes=[pltpu.VMEM((T * M, 4 * H), jnp.float32),   # g_scr
                        pltpu.VMEM((T * M, H), jnp.float32)],      # y_scr
    )(x_tm,
      params["wih0"], params["whh0"], params["b0"],
      params["wih1"], params["whh1"], params["b1"],
      params["wln"], params["bln"],
      params["wend_f"], params["bend_f"])

    # glue: columns of (M, OT*3) are ordered (ot, k) -> reshape is free.
    return out.reshape(B, N, OT3 // 3, 3)


# ------------------------ pure-JAX reference (fp32) --------------------------

def reference_forward(x, p, in_channels):
    B, N, T, _ = x.shape
    H = p["whh0"].shape[0]
    M = B * N
    xs = x[..., :in_channels].reshape(M, T, in_channels)

    def run_layer(inp, wih, whh, b):
        h = jnp.zeros((M, H), jnp.float32)
        c = jnp.zeros((M, H), jnp.float32)
        outs = []
        for t in range(T):
            gates = inp[:, t, :] @ wih + h @ whh + b
            i_g = jax.nn.sigmoid(gates[:, :H])
            f_g = jax.nn.sigmoid(gates[:, H:2 * H])
            g_g = jnp.tanh(gates[:, 2 * H:3 * H])
            o_g = jax.nn.sigmoid(gates[:, 3 * H:])
            c = f_g * c + i_g * g_g
            h = o_g * jnp.tanh(c)
            outs.append(h)
        return jnp.stack(outs, axis=1)

    y0 = run_layer(xs, p["wih0"], p["whh0"], p["b0"])
    y1 = run_layer(y0, p["wih1"], p["whh1"], p["b1"])
    rnn_out = y1.reshape(B, N, T, H)
    y = jnp.maximum(rnn_out @ p["wln"] + p["bln"], 0.0)
    out = y * jnp.tanh(y)
    out = out.reshape(B, N, T * H) @ p["wend"] + p["bend"]
    out = out[..., None] * p["w1"] + p["b1e"]
    return out


# --------------------------------- main --------------------------------------

if __name__ == "__main__":
    # small shapes consistent with the module's forward
    B, N, T, F = 2, 4, 8, 6        # batch, num_nodes, input_time_len, raw feat
    C_IN, H, OT = 4, 32, 3         # in_channels, out_channels (hidden), output_time_len

    key = jax.random.PRNGKey(0)
    ks = jax.random.split(key, 13)
    s = 0.1
    raw_params = {
        "wih0": jax.random.normal(ks[0], (C_IN, 4 * H), jnp.float32) * s,
        "whh0": jax.random.normal(ks[1], (H, 4 * H), jnp.float32) * s,
        "b0":   jax.random.normal(ks[2], (1, 4 * H), jnp.float32) * s,
        "wih1": jax.random.normal(ks[3], (H, 4 * H), jnp.float32) * s,
        "whh1": jax.random.normal(ks[4], (H, 4 * H), jnp.float32) * s,
        "b1":   jax.random.normal(ks[5], (1, 4 * H), jnp.float32) * s,
        "wln":  jax.random.normal(ks[6], (H, H), jnp.float32) * s,
        "bln":  jax.random.normal(ks[7], (1, H), jnp.float32) * s,
        "wend": jax.random.normal(ks[8], (T * H, OT), jnp.float32) * s,
        "bend": jax.random.normal(ks[9], (1, OT), jnp.float32) * s,
        "w1":   jax.random.normal(ks[10], (3,), jnp.float32) * s,   # end1 weight (3,1)[:,0]
        "b1e":  jax.random.normal(ks[11], (3,), jnp.float32) * s,   # end1 bias
    }
    x = jax.random.normal(ks[12], (B, N, T, F), jnp.float32)

    params = prepare_params(raw_params, T, H)

    fwd = jax.jit(lambda xx: att_lstm_forward(xx, params, C_IN))
    out = jax.block_until_ready(fwd(x))
    assert out.shape == (B, N, OT, 3), out.shape

    ref = reference_forward(x, raw_params, C_IN)
    np.testing.assert_allclose(np.asarray(out), np.asarray(ref),
                               rtol=5e-2, atol=5e-2)
    print("KERNEL_OK")
</pallas_src>

<mosaic_0001>
module attributes {stable_mosaic.version = 11 : i64} {
  func.func @fused_att_lstm_kernel(%arg0: memref<64x4xf32, #tpu.memory_space<vmem>>, %arg1: memref<4x128xbf16, #tpu.memory_space<vmem>>, %arg2: memref<32x128xbf16, #tpu.memory_space<vmem>>, %arg3: memref<1x128xf32, #tpu.memory_space<vmem>>, %arg4: memref<32x128xbf16, #tpu.memory_space<vmem>>, %arg5: memref<32x128xbf16, #tpu.memory_space<vmem>>, %arg6: memref<1x128xf32, #tpu.memory_space<vmem>>, %arg7: memref<32x32xbf16, #tpu.memory_space<vmem>>, %arg8: memref<1x32xf32, #tpu.memory_space<vmem>>, %arg9: memref<8x32x9xbf16, #tpu.memory_space<vmem>>, %arg10: memref<1x9xf32, #tpu.memory_space<vmem>>, %arg11: memref<8x9xf32, #tpu.memory_space<vmem>>, %arg12: memref<64x128xf32, #tpu.memory_space<vmem>>, %arg13: memref<64x32xf32, #tpu.memory_space<vmem>>) attributes {dimension_semantics = [], scalar_prefetch = 0 : i64, scratch_operands = 2 : i64, tpu.core_type = #tpu.core_type<tc>} {
    %c0 = arith.constant 0 : index
    %c0_0 = arith.constant 0 : index
    %0 = vector.load %arg0[%c0, %c0_0] : memref<64x4xf32, #tpu.memory_space<vmem>>, vector<64x4xf32>
    %c0_1 = arith.constant 0 : index
    %c0_2 = arith.constant 0 : index
    %1 = vector.load %arg1[%c0_1, %c0_2] : memref<4x128xbf16, #tpu.memory_space<vmem>>, vector<4x128xbf16>
    %2 = arith.truncf %0 : vector<64x4xf32> to vector<64x4xbf16>
    %cst = arith.constant dense<0.000000e+00> : vector<64x128xf32>
    %3 = tpu.matmul %2, %1, %cst {dimension_numbers = #tpu.dot_dimension_numbers<[1], [0], [0], [1], [0, 0, 1, 1], [], []>} : vector<64x4xbf16>, vector<4x128xbf16>, vector<64x128xf32> -> vector<64x128xf32>
    %c0_3 = arith.constant 0 : index
    %c0_4 = arith.constant 0 : index
    %4 = vector.load %arg3[%c0_3, %c0_4] : memref<1x128xf32, #tpu.memory_space<vmem>>, vector<1x128xf32>
    %5 = vector.broadcast %4 : vector<1x128xf32> to vector<64x128xf32>
    %6 = arith.addf %3, %5 : vector<64x128xf32>
    %c0_5 = arith.constant 0 : index
    %c0_6 = arith.constant 0 : index
    %7 = vector.load %arg12[%c0_5, %c0_6] : memref<64x128xf32, #tpu.memory_space<vmem>>, vector<64x128xf32>
    tpu.vector_store %arg12[%c0_5, %c0_6], %6 {strides = array<i32>} : memref<64x128xf32, #tpu.memory_space<vmem>>, vector<64x128xf32>,
    %c0_7 = arith.constant 0 : index
    %c0_8 = arith.constant 0 : index
    %8 = vector.load %arg2[%c0_7, %c0_8] : memref<32x128xbf16, #tpu.memory_space<vmem>>, vector<32x128xbf16>
    %cst_9 = arith.constant 0.000000e+00 : f32
    %9 = vector.broadcast %cst_9 : f32 to vector<8x32xf32>
    %c0_i32 = arith.constant 0 : i32
    %c8_i32 = arith.constant 8 : i32
    %10 = arith.muli %c0_i32, %c8_i32 : i32
    %11 = tpu.assume_multiple %10, 8 : i32
    %12 = arith.index_cast %11 : i32 to index
    %c0_10 = arith.constant 0 : index
    %13 = vector.load %arg12[%12, %c0_10] : memref<64x128xf32, #tpu.memory_space<vmem>>, vector<8x128xf32>
    %14 = arith.truncf %9 : vector<8x32xf32> to vector<8x32xbf16>
    %cst_11 = arith.constant dense<0.000000e+00> : vector<8x128xf32>
    %15 = tpu.matmul %14, %8, %cst_11 {dimension_numbers = #tpu.dot_dimension_numbers<[1], [0], [0], [1], [0, 0, 1, 1], [], []>} : vector<8x32xbf16>, vector<32x128xbf16>, vector<8x128xf32> -> vector<8x128xf32>
    %16 = arith.addf %13, %15 : vector<8x128xf32>
    %17 = vector.extract_strided_slice %16 {offsets = [0, 0], sizes = [8, 32], strides = [1, 1]} : vector<8x128xf32> to vector<8x32xf32>
    %18 = arith.negf %17 : vector<8x32xf32>
    %19 = math.exp %18 : vector<8x32xf32>
    %cst_12 = arith.constant 1.000000e+00 : f32
    %20 = vector.broadcast %cst_12 : f32 to vector<8x32xf32>
    %21 = arith.addf %20, %19 : vector<8x32xf32>
    %22 = arith.divf %20, %21 : vector<8x32xf32>
    %23 = vector.extract_strided_slice %16 {offsets = [0, 32], sizes = [8, 32], strides = [1, 1]} : vector<8x128xf32> to vector<8x32xf32>
    %24 = arith.negf %23 : vector<8x32xf32>
    %25 = math.exp %24 : vector<8x32xf32>
    %cst_13 = arith.constant 1.000000e+00 : f32
    %26 = vector.broadcast %cst_13 : f32 to vector<8x32xf32>
    %27 = arith.addf %26, %25 : vector<8x32xf32>
    %28 = arith.divf %26, %27 : vector<8x32xf32>
    %29 = vector.extract_strided_slice %16 {offsets = [0, 64], sizes = [8, 32], strides = [1, 1]} : vector<8x128xf32> to vector<8x32xf32>
    %30 = math.tanh %29 : vector<8x32xf32>
    %31 = vector.extract_strided_slice %16 {offsets = [0, 96], sizes = [8, 32], strides = [1, 1]} : vector<8x128xf32> to vector<8x32xf32>
    %32 = arith.negf %31 : vector<8x32xf32>
    %33 = math.exp %32 : vector<8x32xf32>
    %cst_14 = arith.constant 1.000000e+00 : f32
    %34 = vector.broadcast %cst_14 : f32 to vector<8x32xf32>
    %35 = arith.addf %34, %33 : vector<8x32xf32>
    %36 = arith.divf %34, %35 : vector<8x32xf32>
    %37 = arith.mulf %28, %9 : vector<8x32xf32>
    %38 = arith.mulf %22, %30 : vector<8x32xf32>
    %39 = arith.addf %37, %38 : vector<8x32xf32>
    %40 = math.tanh %39 : vector<8x32xf32>
    %41 = arith.mulf %36, %40 : vector<8x32xf32>
    %42 = arith.index_cast %11 : i32 to index
    %c0_15 = arith.constant 0 : index
    %43 = vector.load %arg13[%42, %c0_15] : memref<64x32xf32, #tpu.memory_space<vmem>>, vector<8x32xf32>
    tpu.vector_store %arg13[%42, %c0_15], %41 {strides = array<i32>} : memref<64x32xf32, #tpu.memory_space<vmem>>, vector<8x32xf32>,
    %c1_i32 = arith.constant 1 : i32
    %c8_i32_16 = arith.constant 8 : i32
    %44 = arith.muli %c1_i32, %c8_i32_16 : i32
    %45 = tpu.assume_multiple %44, 8 : i32
    %46 = arith.index_cast %45 : i32 to index
    %c0_17 = arith.constant 0 : index
    %47 = vector.load %arg12[%46, %c0_17] : memref<64x128xf32, #tpu.memory_space<vmem>>, vector<8x128xf32>
    %48 = arith.truncf %41 : vector<8x32xf32> to vector<8x32xbf16>
    %cst_18 = arith.constant dense<0.000000e+00> : vector<8x128xf32>
    %49 = tpu.matmul %48, %8, %cst_18 {dimension_numbers = #tpu.dot_dimension_numbers<[1], [0], [0], [1], [0, 0, 1, 1], [], []>} : vector<8x32xbf16>, vector<32x128xbf16>, vector<8x128xf32> -> vector<8x128xf32>
    %50 = arith.addf %47, %49 : vector<8x128xf32>
    %51 = vector.extract_strided_slice %50 {offsets = [0, 0], sizes = [8, 32], strides = [1, 1]} : vector<8x128xf32> to vector<8x32xf32>
    %52 = arith.negf %51 : vector<8x32xf32>
    %53 = math.exp %52 : vector<8x32xf32>
    %cst_19 = arith.constant 1.000000e+00 : f32
    %54 = vector.broadcast %cst_19 : f32 to vector<8x32xf32>
    %55 = arith.addf %54, %53 : vector<8x32xf32>
    %56 = arith.divf %54, %55 : vector<8x32xf32>
    %57 = vector.extract_strided_slice %50 {offsets = [0, 32], sizes = [8, 32], strides = [1, 1]} : vector<8x128xf32> to vector<8x32xf32>
    %58 = arith.negf %57 : vector<8x32xf32>
    %59 = math.exp %58 : vector<8x32xf32>
    %cst_20 = arith.constant 1.000000e+00 : f32
    %60 = vector.broadcast %cst_20 : f32 to vector<8x32xf32>
    %61 = arith.addf %60, %59 : vector<8x32xf32>
    %62 = arith.divf %60, %61 : vector<8x32xf32>
    %63 = vector.extract_strided_slice %50 {offsets = [0, 64], sizes = [8, 32], strides = [1, 1]} : vector<8x128xf32> to vector<8x32xf32>
    %64 = math.tanh %63 : vector<8x32xf32>
    %65 = vector.extract_strided_slice %50 {offsets = [0, 96], sizes = [8, 32], strides = [1, 1]} : vector<8x128xf32> to vector<8x32xf32>
    %66 = arith.negf %65 : vector<8x32xf32>
    %67 = math.exp %66 : vector<8x32xf32>
    %cst_21 = arith.constant 1.000000e+00 : f32
    %68 = vector.broadcast %cst_21 : f32 to vector<8x32xf32>
    %69 = arith.addf %68, %67 : vector<8x32xf32>
    %70 = arith.divf %68, %69 : vector<8x32xf32>
    %71 = arith.mulf %62, %39 : vector<8x32xf32>
    %72 = arith.mulf %56, %64 : vector<8x32xf32>
    %73 = arith.addf %71, %72 : vector<8x32xf32>
    %74 = math.tanh %73 : vector<8x32xf32>
    %75 = arith.mulf %70, %74 : vector<8x32xf32>
    %76 = arith.index_cast %45 : i32 to index
    %c0_22 = arith.constant 0 : index
    %77 = vector.load %arg13[%76, %c0_22] : memref<64x32xf32, #tpu.memory_space<vmem>>, vector<8x32xf32>
    tpu.vector_store %arg13[%76, %c0_22], %75 {strides = array<i32>} : memref<64x32xf32, #tpu.memory_space<vmem>>, vector<8x32xf32>,
    %c2_i32 = arith.constant 2 : i32
    %c8_i32_23 = arith.constant 8 : i32
    %78 = arith.muli %c2_i32, %c8_i32_23 : i32
    %79 = tpu.assume_multiple %78, 8 : i32
    %80 = arith.index_cast %79 : i32 to index
    %c0_24 = arith.constant 0 : index
    %81 = vector.load %arg12[%80, %c0_24] : memref<64x128xf32, #tpu.memory_space<vmem>>, vector<8x128xf32>
    %82 = arith.truncf %75 : vector<8x32xf32> to vector<8x32xbf16>
    %cst_25 = arith.constant dense<0.000000e+00> : vector<8x128xf32>
    %83 = tpu.matmul %82, %8, %cst_25 {dimension_numbers = #tpu.dot_dimension_numbers<[1], [0], [0], [1], [0, 0, 1, 1], [], []>} : vector<8x32xbf16>, vector<32x128xbf16>, vector<8x128xf32> -> vector<8x128xf32>
    %84 = arith.addf %81, %83 : vector<8x128xf32>
    %85 = vector.extract_strided_slice %84 {offsets = [0, 0], sizes = [8, 32], strides = [1, 1]} : vector<8x128xf32> to vector<8x32xf32>
    %86 = arith.negf %85 : vector<8x32xf32>
    %87 = math.exp %86 : vector<8x32xf32>
    %cst_26 = arith.constant 1.000000e+00 : f32
    %88 = vector.broadcast %cst_26 : f32 to vector<8x32xf32>
    %89 = arith.addf %88, %87 : vector<8x32xf32>
    %90 = arith.divf %88, %89 : vector<8x32xf32>
    %91 = vector.extract_strided_slice %84 {offsets = [0, 32], sizes = [8, 32], strides = [1, 1]} : vector<8x128xf32> to vector<8x32xf32>
    %92 = arith.negf %91 : vector<8x32xf32>
    %93 = math.exp %92 : vector<8x32xf32>
    %cst_27 = arith.constant 1.000000e+00 : f32
    %94 = vector.broadcast %cst_27 : f32 to vector<8x32xf32>
    %95 = arith.addf %94, %93 : vector<8x32xf32>
    %96 = arith.divf %94, %95 : vector<8x32xf32>
    %97 = vector.extract_strided_slice %84 {offsets = [0, 64], sizes = [8, 32], strides = [1, 1]} : vector<8x128xf32> to vector<8x32xf32>
    %98 = math.tanh %97 : vector<8x32xf32>
    %99 = vector.extract_strided_slice %84 {offsets = [0, 96], sizes = [8, 32], strides = [1, 1]} : vector<8x128xf32> to vector<8x32xf32>
    %100 = arith.negf %99 : vector<8x32xf32>
    %101 = math.exp %100 : vector<8x32xf32>
    %cst_28 = arith.constant 1.000000e+00 : f32
    %102 = vector.broadcast %cst_28 : f32 to vector<8x32xf32>
    %103 = arith.addf %102, %101 : vector<8x32xf32>
    %104 = arith.divf %102, %103 : vector<8x32xf32>
    %105 = arith.mulf %96, %73 : vector<8x32xf32>
    %106 = arith.mulf %90, %98 : vector<8x32xf32>
    %107 = arith.addf %105, %106 : vector<8x32xf32>
    %108 = math.tanh %107 : vector<8x32xf32>
    %109 = arith.mulf %104, %108 : vector<8x32xf32>
    %110 = arith.index_cast %79 : i32 to index
    %c0_29 = arith.constant 0 : index
    %111 = vector.load %arg13[%110, %c0_29] : memref<64x32xf32, #tpu.memory_space<vmem>>, vector<8x32xf32>
    tpu.vector_store %arg13[%110, %c0_29], %109 {strides = array<i32>} : memref<64x32xf32, #tpu.memory_space<vmem>>, vector<8x32xf32>,
    %c3_i32 = arith.constant 3 : i32
    %c8_i32_30 = arith.constant 8 : i32
    %112 = arith.muli %c3_i32, %c8_i32_30 : i32
    %113 = tpu.assume_multiple %112, 8 : i32
    %114 = arith.index_cast %113 : i32 to index
    %c0_31 = arith.constant 0 : index
    %115 = vector.load %arg12[%114, %c0_31] : memref<64x128xf32, #tpu.memory_space<vmem>>, vector<8x128xf32>
    %116 = arith.truncf %109 : vector<8x32xf32> to vector<8x32xbf16>
    %cst_32 = arith.constant dense<0.000000e+00> : vector<8x128xf32>
    %117 = tpu.matmul %116, %8, %cst_32 {dimension_numbers = #tpu.dot_dimension_numbers<[1], [0], [0], [1], [0, 0, 1, 1], [], []>} : vector<8x32xbf16>, vector<32x128xbf16>, vector<8x128xf32> -> vector<8x128xf32>
    %118 = arith.addf %115, %117 : vector<8x128xf32>
    %119 = vector.extract_strided_slice %118 {offsets = [0, 0], sizes = [8, 32], strides = [1, 1]} : vector<8x128xf32> to vector<8x32xf32>
    %120 = arith.negf %119 : vector<8x32xf32>
    %121 = math.exp %120 : vector<8x32xf32>
    %cst_33 = arith.constant 1.000000e+00 : f32
    %122 = vector.broadcast %cst_33 : f32 to vector<8x32xf32>
    %123 = arith.addf %122, %121 : vector<8x32xf32>
    %124 = arith.divf %122, %123 : vector<8x32xf32>
    %125 = vector.extract_strided_slice %118 {offsets = [0, 32], sizes = [8, 32], strides = [1, 1]} : vector<8x128xf32> to vector<8x32xf32>
    %126 = arith.negf %125 : vector<8x32xf32>
    %127 = math.exp %126 : vector<8x32xf32>
    %cst_34 = arith.constant 1.000000e+00 : f32
    %128 = vector.broadcast %cst_34 : f32 to vector<8x32xf32>
    %129 = arith.addf %128, %127 : vector<8x32xf32>
    %130 = arith.divf %128, %129 : vector<8x32xf32>
    %131 = vector.extract_strided_slice %118 {offsets = [0, 64], sizes = [8, 32], strides = [1, 1]} : vector<8x128xf32> to vector<8x32xf32>
    %132 = math.tanh %131 : vector<8x32xf32>
    %133 = vector.extract_strided_slice %118 {offsets = [0, 96], sizes = [8, 32], strides = [1, 1]} : vector<8x128xf32> to vector<8x32xf32>
    %134 = arith.negf %133 : vector<8x32xf32>
    %135 = math.exp %134 : vector<8x32xf32>
    %cst_35 = arith.constant 1.000000e+00 : f32
    %136 = vector.broadcast %cst_35 : f32 to vector<8x32xf32>
    %137 = arith.addf %136, %135 : vector<8x32xf32>
    %138 = arith.divf %136, %137 : vector<8x32xf32>
    %139 = arith.mulf %130, %107 : vector<8x32xf32>
    %140 = arith.mulf %124, %132 : vector<8x32xf32>
    %141 = arith.addf %139, %140 : vector<8x32xf32>
    %142 = math.tanh %141 : vector<8x32xf32>
    %143 = arith.mulf %138, %142 : vector<8x32xf32>
    %144 = arith.index_cast %113 : i32 to index
    %c0_36 = arith.constant 0 : index
    %145 = vector.load %arg13[%144, %c0_36] : memref<64x32xf32, #tpu.memory_space<vmem>>, vector<8x32xf32>
    tpu.vector_store %arg13[%144, %c0_36], %143 {strides = array<i32>} : memref<64x32xf32, #tpu.memory_space<vmem>>, vector<8x32xf32>,
    %c4_i32 = arith.constant 4 : i32
    %c8_i32_37 = arith.constant 8 : i32
    %146 = arith.muli %c4_i32, %c8_i32_37 : i32
    %147 = tpu.assume_multiple %146, 8 : i32
    %148 = arith.index_cast %147 : i32 to index
    %c0_38 = arith.constant 0 : index
    %149 = vector.load %arg12[%148, %c0_38] : memref<64x128xf32, #tpu.memory_space<vmem>>, vector<8x128xf32>
    %150 = arith.truncf %143 : vector<8x32xf32> to vector<8x32xbf16>
    %cst_39 = arith.constant dense<0.000000e+00> : vector<8x128xf32>
    %151 = tpu.matmul %150, %8, %cst_39 {dimension_numbers = #tpu.dot_dimension_numbers<[1], [0], [0], [1], [0, 0, 1, 1], [], []>} : vector<8x32xbf16>, vector<32x128xbf16>, vector<8x128xf32> -> vector<8x128xf32>
    %152 = arith.addf %149, %151 : vector<8x128xf32>
    %153 = vector.extract_strided_slice %152 {offsets = [0, 0], sizes = [8, 32], strides = [1, 1]} : vector<8x128xf32> to vector<8x32xf32>
    %154 = arith.negf %153 : vector<8x32xf32>
    %155 = math.exp %154 : vector<8x32xf32>
    %cst_40 = arith.constant 1.000000e+00 : f32
    %156 = vector.broadcast %cst_40 : f32 to vector<8x32xf32>
    %157 = arith.addf %156, %155 : vector<8x32xf32>
    %158 = arith.divf %156, %157 : vector<8x32xf32>
    %159 = vector.extract_strided_slice %152 {offsets = [0, 32], sizes = [8, 32], strides = [1, 1]} : vector<8x128xf32> to vector<8x32xf32>
    %160 = arith.negf %159 : vector<8x32xf32>
    %161 = math.exp %160 : vector<8x32xf32>
    %cst_41 = arith.constant 1.000000e+00 : f32
    %162 = vector.broadcast %cst_41 : f32 to vector<8x32xf32>
    %163 = arith.addf %162, %161 : vector<8x32xf32>
    %164 = arith.divf %162, %163 : vector<8x32xf32>
    %165 = vector.extract_strided_slice %152 {offsets = [0, 64], sizes = [8, 32], strides = [1, 1]} : vector<8x128xf32> to vector<8x32xf32>
    %166 = math.tanh %165 : vector<8x32xf32>
    %167 = vector.extract_strided_slice %152 {offsets = [0, 96], sizes = [8, 32], strides = [1, 1]} : vector<8x128xf32> to vector<8x32xf32>
    %168 = arith.negf %167 : vector<8x32xf32>
    %169 = math.exp %168 : vector<8x32xf32>
    %cst_42 = arith.constant 1.000000e+00 : f32
    %170 = vector.broadcast %cst_42 : f32 to vector<8x32xf32>
    %171 = arith.addf %170, %169 : vector<8x32xf32>
    %172 = arith.divf %170, %171 : vector<8x32xf32>
    %173 = arith.mulf %164, %141 : vector<8x32xf32>
    %174 = arith.mulf %158, %166 : vector<8x32xf32>
    %175 = arith.addf %173, %174 : vector<8x32xf32>
    %176 = math.tanh %175 : vector<8x32xf32>
    %177 = arith.mulf %172, %176 : vector<8x32xf32>
    %178 = arith.index_cast %147 : i32 to index
    %c0_43 = arith.constant 0 : index
    %179 = vector.load %arg13[%178, %c0_43] : memref<64x32xf32, #tpu.memory_space<vmem>>, vector<8x32xf32>
    tpu.vector_store %arg13[%178, %c0_43], %177 {strides = array<i32>} : memref<64x32xf32, #tpu.memory_space<vmem>>, vector<8x32xf32>,
    %c5_i32 = arith.constant 5 : i32
    %c8_i32_44 = arith.constant 8 : i32
    %180 = arith.muli %c5_i32, %c8_i32_44 : i32
    %181 = tpu.assume_multiple %180, 8 : i32
    %182 = arith.index_cast %181 : i32 to index
    %c0_45 = arith.constant 0 : index
    %183 = vector.load %arg12[%182, %c0_45] : memref<64x128xf32, #tpu.memory_space<vmem>>, vector<8x128xf32>
    %184 = arith.truncf %177 : vector<8x32xf32> to vector<8x32xbf16>
    %cst_46 = arith.constant dense<0.000000e+00> : vector<8x128xf32>
    %185 = tpu.matmul %184, %8, %cst_46 {dimension_numbers = #tpu.dot_dimension_numbers<[1], [0], [0], [1], [0, 0, 1, 1], [], []>} : vector<8x32xbf16>, vector<32x128xbf16>, vector<8x128xf32> -> vector<8x128xf32>
    %186 = arith.addf %183, %185 : vector<8x128xf32>
    %187 = vector.extract_strided_slice %186 {offsets = [0, 0], sizes = [8, 32], strides = [1, 1]} : vector<8x128xf32> to vector<8x32xf32>
    %188 = arith.negf %187 : vector<8x32xf32>
    %189 = math.exp %188 : vector<8x32xf32>
    %cst_47 = arith.constant 1.000000e+00 : f32
    %190 = vector.broadcast %cst_47 : f32 to vector<8x32xf32>
    %191 = arith.addf %190, %189 : vector<8x32xf32>
    %192 = arith.divf %190, %191 : vector<8x32xf32>
    %193 = vector.extract_strided_slice %186 {offsets = [0, 32], sizes = [8, 32], strides = [1, 1]} : vector<8x128xf32> to vector<8x32xf32>
    %194 = arith.negf %193 : vector<8x32xf32>
    %195 = math.exp %194 : vector<8x32xf32>
    %cst_48 = arith.constant 1.000000e+00 : f32
    %196 = vector.broadcast %cst_48 : f32 to vector<8x32xf32>
    %197 = arith.addf %196, %195 : vector<8x32xf32>
    %198 = arith.divf %196, %197 : vector<8x32xf32>
    %199 = vector.extract_strided_slice %186 {offsets = [0, 64], sizes = [8, 32], strides = [1, 1]} : vector<8x128xf32> to vector<8x32xf32>
    %200 = math.tanh %199 : vector<8x32xf32>
    %201 = vector.extract_strided_slice %186 {offsets = [0, 96], sizes = [8, 32], strides = [1, 1]} : vector<8x128xf32> to vector<8x32xf32>
    %202 = arith.negf %201 : vector<8x32xf32>
    %203 = math.exp %202 : vector<8x32xf32>
    %cst_49 = arith.constant 1.000000e+00 : f32
    %204 = vector.broadcast %cst_49 : f32 to vector<8x32xf32>
    %205 = arith.addf %204, %203 : vector<8x32xf32>
    %206 = arith.divf %204, %205 : vector<8x32xf32>
    %207 = arith.mulf %198, %175 : vector<8x32xf32>
    %208 = arith.mulf %192, %200 : vector<8x32xf32>
    %209 = arith.addf %207, %208 : vector<8x32xf32>
    %210 = math.tanh %209 : vector<8x32xf32>
    %211 = arith.mulf %206, %210 : vector<8x32xf32>
    %212 = arith.index_cast %181 : i32 to index
    %c0_50 = arith.constant 0 : index
    %213 = vector.load %arg13[%212, %c0_50] : memref<64x32xf32, #tpu.memory_space<vmem>>, vector<8x32xf32>
    tpu.vector_store %arg13[%212, %c0_50], %211 {strides = array<i32>} : memref<64x32xf32, #tpu.memory_space<vmem>>, vector<8x32xf32>,
    %c6_i32 = arith.constant 6 : i32
    %c8_i32_51 = arith.constant 8 : i32
    %214 = arith.muli %c6_i32, %c8_i32_51 : i32
    %215 = tpu.assume_multiple %214, 8 : i32
    %216 = arith.index_cast %215 : i32 to index
    %c0_52 = arith.constant 0 : index
    %217 = vector.load %arg12[%216, %c0_52] : memref<64x128xf32, #tpu.memory_space<vmem>>, vector<8x128xf32>
    %218 = arith.truncf %211 : vector<8x32xf32> to vector<8x32xbf16>
    %cst_53 = arith.constant dense<0.000000e+00> : vector<8x128xf32>
    %219 = tpu.matmul %218, %8, %cst_53 {dimension_numbers = #tpu.dot_dimension_numbers<[1], [0], [0], [1], [0, 0, 1, 1], [], []>} : vector<8x32xbf16>, vector<32x128xbf16>, vector<8x128xf32> -> vector<8x128xf32>
    %220 = arith.addf %217, %219 : vector<8x128xf32>
    %221 = vector.extract_strided_slice %220 {offsets = [0, 0], sizes = [8, 32], strides = [1, 1]} : vector<8x128xf32> to vector<8x32xf32>
    %222 = arith.negf %221 : vector<8x32xf32>
    %223 = math.exp %222 : vector<8x32xf32>
    %cst_54 = arith.constant 1.000000e+00 : f32
    %224 = vector.broadcast %cst_54 : f32 to vector<8x32xf32>
    %225 = arith.addf %224, %223 : vector<8x32xf32>
    %226 = arith.divf %224, %225 : vector<8x32xf32>
    %227 = vector.extract_strided_slice %220 {offsets = [0, 32], sizes = [8, 32], strides = [1, 1]} : vector<8x128xf32> to vector<8x32xf32>
    %228 = arith.negf %227 : vector<8x32xf32>
    %229 = math.exp %228 : vector<8x32xf32>
    %cst_55 = arith.constant 1.000000e+00 : f32
    %230 = vector.broadcast %cst_55 : f32 to vector<8x32xf32>
    %231 = arith.addf %230, %229 : vector<8x32xf32>
    %232 = arith.divf %230, %231 : vector<8x32xf32>
    %233 = vector.extract_strided_slice %220 {offsets = [0, 64], sizes = [8, 32], strides = [1, 1]} : vector<8x128xf32> to vector<8x32xf32>
    %234 = math.tanh %233 : vector<8x32xf32>
    %235 = vector.extract_strided_slice %220 {offsets = [0, 96], sizes = [8, 32], strides = [1, 1]} : vector<8x128xf32> to vector<8x32xf32>
    %236 = arith.negf %235 : vector<8x32xf32>
    %237 = math.exp %236 : vector<8x32xf32>
    %cst_56 = arith.constant 1.000000e+00 : f32
    %238 = vector.broadcast %cst_56 : f32 to vector<8x32xf32>
    %239 = arith.addf %238, %237 : vector<8x32xf32>
    %240 = arith.divf %238, %239 : vector<8x32xf32>
    %241 = arith.mulf %232, %209 : vector<8x32xf32>
    %242 = arith.mulf %226, %234 : vector<8x32xf32>
    %243 = arith.addf %241, %242 : vector<8x32xf32>
    %244 = math.tanh %243 : vector<8x32xf32>
    %245 = arith.mulf %240, %244 : vector<8x32xf32>
    %246 = arith.index_cast %215 : i32 to index
    %c0_57 = arith.constant 0 : index
    %247 = vector.load %arg13[%246, %c0_57] : memref<64x32xf32, #tpu.memory_space<vmem>>, vector<8x32xf32>
    tpu.vector_store %arg13[%246, %c0_57], %245 {strides = array<i32>} : memref<64x32xf32, #tpu.memory_space<vmem>>, vector<8x32xf32>,
    %c7_i32 = arith.constant 7 : i32
    %c8_i32_58 = arith.constant 8 : i32
    %248 = arith.muli %c7_i32, %c8_i32_58 : i32
    %249 = tpu.assume_multiple %248, 8 : i32
    %250 = arith.index_cast %249 : i32 to index
    %c0_59 = arith.constant 0 : index
    %251 = vector.load %arg12[%250, %c0_59] : memref<64x128xf32, #tpu.memory_space<vmem>>, vector<8x128xf32>
    %252 = arith.truncf %245 : vector<8x32xf32> to vector<8x32xbf16>
    %cst_60 = arith.constant dense<0.000000e+00> : vector<8x128xf32>
    %253 = tpu.matmul %252, %8, %cst_60 {dimension_numbers = #tpu.dot_dimension_numbers<[1], [0], [0], [1], [0, 0, 1, 1], [], []>} : vector<8x32xbf16>, vector<32x128xbf16>, vector<8x128xf32> -> vector<8x128xf32>
    %254 = arith.addf %251, %253 : vector<8x128xf32>
    %255 = vector.extract_strided_slice %254 {offsets = [0, 0], sizes = [8, 32], strides = [1, 1]} : vector<8x128xf32> to vector<8x32xf32>
    %256 = arith.negf %255 : vector<8x32xf32>
    %257 = math.exp %256 : vector<8x32xf32>
    %cst_61 = arith.constant 1.000000e+00 : f32
    %258 = vector.broadcast %cst_61 : f32 to vector<8x32xf32>
    %259 = arith.addf %258, %257 : vector<8x32xf32>
    %260 = arith.divf %258, %259 : vector<8x32xf32>
    %261 = vector.extract_strided_slice %254 {offsets = [0, 32], sizes = [8, 32], strides = [1, 1]} : vector<8x128xf32> to vector<8x32xf32>
    %262 = arith.negf %261 : vector<8x32xf32>
    %263 = math.exp %262 : vector<8x32xf32>
    %cst_62 = arith.constant 1.000000e+00 : f32
    %264 = vector.broadcast %cst_62 : f32 to vector<8x32xf32>
    %265 = arith.addf %264, %263 : vector<8x32xf32>
    %266 = arith.divf %264, %265 : vector<8x32xf32>
    %267 = vector.extract_strided_slice %254 {offsets = [0, 64], sizes = [8, 32], strides = [1, 1]} : vector<8x128xf32> to vector<8x32xf32>
    %268 = math.tanh %267 : vector<8x32xf32>
    %269 = vector.extract_strided_slice %254 {offsets = [0, 96], sizes = [8, 32], strides = [1, 1]} : vector<8x128xf32> to vector<8x32xf32>
    %270 = arith.negf %269 : vector<8x32xf32>
    %271 = math.exp %270 : vector<8x32xf32>
    %cst_63 = arith.constant 1.000000e+00 : f32
    %272 = vector.broadcast %cst_63 : f32 to vector<8x32xf32>
    %273 = arith.addf %272, %271 : vector<8x32xf32>
    %274 = arith.divf %272, %273 : vector<8x32xf32>
    %275 = arith.mulf %266, %243 : vector<8x32xf32>
    %276 = arith.mulf %260, %268 : vector<8x32xf32>
    %277 = arith.addf %275, %276 : vector<8x32xf32>
    %278 = math.tanh %277 : vector<8x32xf32>
    %279 = arith.mulf %274, %278 : vector<8x32xf32>
    %280 = arith.index_cast %249 : i32 to index
    %c0_64 = arith.constant 0 : index
    %281 = vector.load %arg13[%280, %c0_64] : memref<64x32xf32, #tpu.memory_space<vmem>>, vector<8x32xf32>
    tpu.vector_store %arg13[%280, %c0_64], %279 {strides = array<i32>} : memref<64x32xf32, #tpu.memory_space<vmem>>, vector<8x32xf32>,
    %c8_i32_65 = arith.constant 8 : i32
    %c0_66 = arith.constant 0 : index
    %c0_67 = arith.constant 0 : index
    %282 = vector.load %arg13[%c0_66, %c0_67] : memref<64x32xf32, #tpu.memory_space<vmem>>, vector<64x32xf32>
    %c0_68 = arith.constant 0 : index
    %c0_69 = arith.constant 0 : index
    %283 = vector.load %arg4[%c0_68, %c0_69] : memref<32x128xbf16, #tpu.memory_space<vmem>>, vector<32x128xbf16>
    %284 = arith.truncf %282 : vector<64x32xf32> to vector<64x32xbf16>
    %cst_70 = arith.constant dense<0.000000e+00> : vector<64x128xf32>
    %285 = tpu.matmul %284, %283, %cst_70 {dimension_numbers = #tpu.dot_dimension_numbers<[1], [0], [0], [1], [0, 0, 1, 1], [], []>} : vector<64x32xbf16>, vector<32x128xbf16>, vector<64x128xf32> -> vector<64x128xf32>
    %c0_71 = arith.constant 0 : index
    %c0_72 = arith.constant 0 : index
    %286 = vector.load %arg6[%c0_71, %c0_72] : memref<1x128xf32, #tpu.memory_space<vmem>>, vector<1x128xf32>
    %287 = vector.broadcast %286 : vector<1x128xf32> to vector<64x128xf32>
    %288 = arith.addf %285, %287 : vector<64x128xf32>
    %c0_73 = arith.constant 0 : index
    %c0_74 = arith.constant 0 : index
    %289 = vector.load %arg12[%c0_73, %c0_74] : memref<64x128xf32, #tpu.memory_space<vmem>>, vector<64x128xf32>
    tpu.vector_store %arg12[%c0_73, %c0_74], %288 {strides = array<i32>} : memref<64x128xf32, #tpu.memory_space<vmem>>, vector<64x128xf32>,
    %c0_75 = arith.constant 0 : index
    %c0_76 = arith.constant 0 : index
    %290 = vector.load %arg5[%c0_75, %c0_76] : memref<32x128xbf16, #tpu.memory_space<vmem>>, vector<32x128xbf16>
    %cst_77 = arith.constant 0.000000e+00 : f32
    %291 = vector.broadcast %cst_77 : f32 to vector<8x32xf32>
    %c0_i32_78 = arith.constant 0 : i32
    %c8_i32_79 = arith.constant 8 : i32
    %292 = arith.muli %c0_i32_78, %c8_i32_79 : i32
    %293 = tpu.assume_multiple %292, 8 : i32
    %294 = arith.index_cast %293 : i32 to index
    %c0_80 = arith.constant 0 : index
    %295 = vector.load %arg12[%294, %c0_80] : memref<64x128xf32, #tpu.memory_space<vmem>>, vector<8x128xf32>
    %296 = arith.truncf %291 : vector<8x32xf32> to vector<8x32xbf16>
    %cst_81 = arith.constant dense<0.000000e+00> : vector<8x128xf32>
    %297 = tpu.matmul %296, %290, %cst_81 {dimension_numbers = #tpu.dot_dimension_numbers<[1], [0], [0], [1], [0, 0, 1, 1], [], []>} : vector<8x32xbf16>, vector<32x128xbf16>, vector<8x128xf32> -> vector<8x128xf32>
    %298 = arith.addf %295, %297 : vector<8x128xf32>
    %299 = vector.extract_strided_slice %298 {offsets = [0, 0], sizes = [8, 32], strides = [1, 1]} : vector<8x128xf32> to vector<8x32xf32>
    %300 = arith.negf %299 : vector<8x32xf32>
    %301 = math.exp %300 : vector<8x32xf32>
    %cst_82 = arith.constant 1.000000e+00 : f32
    %302 = vector.broadcast %cst_82 : f32 to vector<8x32xf32>
    %303 = arith.addf %302, %301 : vector<8x32xf32>
    %304 = arith.divf %302, %303 : vector<8x32xf32>
    %305 = vector.extract_strided_slice %298 {offsets = [0, 32], sizes = [8, 32], strides = [1, 1]} : vector<8x128xf32> to vector<8x32xf32>
    %306 = arith.negf %305 : vector<8x32xf32>
    %307 = math.exp %306 : vector<8x32xf32>
    %cst_83 = arith.constant 1.000000e+00 : f32
    %308 = vector.broadcast %cst_83 : f32 to vector<8x32xf32>
    %309 = arith.addf %308, %307 : vector<8x32xf32>
    %310 = arith.divf %308, %309 : vector<8x32xf32>
    %311 = vector.extract_strided_slice %298 {offsets = [0, 64], sizes = [8, 32], strides = [1, 1]} : vector<8x128xf32> to vector<8x32xf32>
    %312 = math.tanh %311 : vector<8x32xf32>
    %313 = vector.extract_strided_slice %298 {offsets = [0, 96], sizes = [8, 32], strides = [1, 1]} : vector<8x128xf32> to vector<8x32xf32>
    %314 = arith.negf %313 : vector<8x32xf32>
    %315 = math.exp %314 : vector<8x32xf32>
    %cst_84 = arith.constant 1.000000e+00 : f32
    %316 = vector.broadcast %cst_84 : f32 to vector<8x32xf32>
    %317 = arith.addf %316, %315 : vector<8x32xf32>
    %318 = arith.divf %316, %317 : vector<8x32xf32>
    %319 = arith.mulf %310, %291 : vector<8x32xf32>
    %320 = arith.mulf %304, %312 : vector<8x32xf32>
    %321 = arith.addf %319, %320 : vector<8x32xf32>
    %322 = math.tanh %321 : vector<8x32xf32>
    %323 = arith.mulf %318, %322 : vector<8x32xf32>
    %324 = arith.index_cast %293 : i32 to index
    %c0_85 = arith.constant 0 : index
    %325 = vector.load %arg13[%324, %c0_85] : memref<64x32xf32, #tpu.memory_space<vmem>>, vector<8x32xf32>
    tpu.vector_store %arg13[%324, %c0_85], %323 {strides = array<i32>} : memref<64x32xf32, #tpu.memory_space<vmem>>, vector<8x32xf32>,
    %c1_i32_86 = arith.constant 1 : i32
    %c8_i32_87 = arith.constant 8 : i32
    %326 = arith.muli %c1_i32_86, %c8_i32_87 : i32
    %327 = tpu.assume_multiple %326, 8 : i32
    %328 = arith.index_cast %327 : i32 to index
    %c0_88 = arith.constant 0 : index
    %329 = vector.load %arg12[%328, %c0_88] : memref<64x128xf32, #tpu.memory_space<vmem>>, vector<8x128xf32>
    %330 = arith.truncf %323 : vector<8x32xf32> to vector<8x32xbf16>
    %cst_89 = arith.constant dense<0.000000e+00> : vector<8x128xf32>
    %331 = tpu.matmul %330, %290, %cst_89 {dimension_numbers = #tpu.dot_dimension_numbers<[1], [0], [0], [1], [0, 0, 1, 1], [], []>} : vector<8x32xbf16>, vector<32x128xbf16>, vector<8x128xf32> -> vector<8x128xf32>
    %332 = arith.addf %329, %331 : vector<8x128xf32>
    %333 = vector.extract_strided_slice %332 {offsets = [0, 0], sizes = [8, 32], strides = [1, 1]} : vector<8x128xf32> to vector<8x32xf32>
    %334 = arith.negf %333 : vector<8x32xf32>
    %335 = math.exp %334 : vector<8x32xf32>
    %cst_90 = arith.constant 1.000000e+00 : f32
    %336 = vector.broadcast %cst_90 : f32 to vector<8x32xf32>
    %337 = arith.addf %336, %335 : vector<8x32xf32>
    %338 = arith.divf %336, %337 : vector<8x32xf32>
    %339 = vector.extract_strided_slice %332 {offsets = [0, 32], sizes = [8, 32], strides = [1, 1]} : vector<8x128xf32> to vector<8x32xf32>
    %340 = arith.negf %339 : vector<8x32xf32>
    %341 = math.exp %340 : vector<8x32xf32>
    %cst_91 = arith.constant 1.000000e+00 : f32
    %342 = vector.broadcast %cst_91 : f32 to vector<8x32xf32>
    %343 = arith.addf %342, %341 : vector<8x32xf32>
    %344 = arith.divf %342, %343 : vector<8x32xf32>
    %345 = vector.extract_strided_slice %332 {offsets = [0, 64], sizes = [8, 32], strides = [1, 1]} : vector<8x128xf32> to vector<8x32xf32>
    %346 = math.tanh %345 : vector<8x32xf32>
    %347 = vector.extract_strided_slice %332 {offsets = [0, 96], sizes = [8, 32], strides = [1, 1]} : vector<8x128xf32> to vector<8x32xf32>
    %348 = arith.negf %347 : vector<8x32xf32>
    %349 = math.exp %348 : vector<8x32xf32>
    %cst_92 = arith.constant 1.000000e+00 : f32
    %350 = vector.broadcast %cst_92 : f32 to vector<8x32xf32>
    %351 = arith.addf %350, %349 : vector<8x32xf32>
    %352 = arith.divf %350, %351 : vector<8x32xf32>
    %353 = arith.mulf %344, %321 : vector<8x32xf32>
    %354 = arith.mulf %338, %346 : vector<8x32xf32>
    %355 = arith.addf %353, %354 : vector<8x32xf32>
    %356 = math.tanh %355 : vector<8x32xf32>
    %357 = arith.mulf %352, %356 : vector<8x32xf32>
    %358 = arith.index_cast %327 : i32 to index
    %c0_93 = arith.constant 0 : index
    %359 = vector.load %arg13[%358, %c0_93] : memref<64x32xf32, #tpu.memory_space<vmem>>, vector<8x32xf32>
    tpu.vector_store %arg13[%358, %c0_93], %357 {strides = array<i32>} : memref<64x32xf32, #tpu.memory_space<vmem>>, vector<8x32xf32>,
    %c2_i32_94 = arith.constant 2 : i32
    %c8_i32_95 = arith.constant 8 : i32
    %360 = arith.muli %c2_i32_94, %c8_i32_95 : i32
    %361 = tpu.assume_multiple %360, 8 : i32
    %362 = arith.index_cast %361 : i32 to index
    %c0_96 = arith.constant 0 : index
    %363 = vector.load %arg12[%362, %c0_96] : memref<64x128xf32, #tpu.memory_space<vmem>>, vector<8x128xf32>
    %364 = arith.truncf %357 : vector<8x32xf32> to vector<8x32xbf16>
    %cst_97 = arith.constant dense<0.000000e+00> : vector<8x128xf32>
    %365 = tpu.matmul %364, %290, %cst_97 {dimension_numbers = #tpu.dot_dimension_numbers<[1], [0], [0], [1], [0, 0, 1, 1], [], []>} : vector<8x32xbf16>, vector<32x128xbf16>, vector<8x128xf32> -> vector<8x128xf32>
    %366 = arith.addf %363, %365 : vector<8x128xf32>
    %367 = vector.extract_strided_slice %366 {offsets = [0, 0], sizes = [8, 32], strides = [1, 1]} : vector<8x128xf32> to vector<8x32xf32>
    %368 = arith.negf %367 : vector<8x32xf32>
    %369 = math.exp %368 : vector<8x32xf32>
    %cst_98 = arith.constant 1.000000e+00 : f32
    %370 = vector.broadcast %cst_98 : f32 to vector<8x32xf32>
    %371 = arith.addf %370, %369 : vector<8x32xf32>
    %372 = arith.divf %370, %371 : vector<8x32xf32>
    %373 = vector.extract_strided_slice %366 {offsets = [0, 32], sizes = [8, 32], strides = [1, 1]} : vector<8x128xf32> to vector<8x32xf32>
    %374 = arith.negf %373 : vector<8x32xf32>
    %375 = math.exp %374 : vector<8x32xf32>
    %cst_99 = arith.constant 1.000000e+00 : f32
    %376 = vector.broadcast %cst_99 : f32 to vector<8x32xf32>
    %377 = arith.addf %376, %375 : vector<8x32xf32>
    %378 = arith.divf %376, %377 : vector<8x32xf32>
    %379 = vector.extract_strided_slice %366 {offsets = [0, 64], sizes = [8, 32], strides = [1, 1]} : vector<8x128xf32> to vector<8x32xf32>
    %380 = math.tanh %379 : vector<8x32xf32>
    %381 = vector.extract_strided_slice %366 {offsets = [0, 96], sizes = [8, 32], strides = [1, 1]} : vector<8x128xf32> to vector<8x32xf32>
    %382 = arith.negf %381 : vector<8x32xf32>
    %383 = math.exp %382 : vector<8x32xf32>
    %cst_100 = arith.constant 1.000000e+00 : f32
    %384 = vector.broadcast %cst_100 : f32 to vector<8x32xf32>
    %385 = arith.addf %384, %383 : vector<8x32xf32>
    %386 = arith.divf %384, %385 : vector<8x32xf32>
    %387 = arith.mulf %378, %355 : vector<8x32xf32>
    %388 = arith.mulf %372, %380 : vector<8x32xf32>
    %389 = arith.addf %387, %388 : vector<8x32xf32>
    %390 = math.tanh %389 : vector<8x32xf32>
    %391 = arith.mulf %386, %390 : vector<8x32xf32>
    %392 = arith.index_cast %361 : i32 to index
    %c0_101 = arith.constant 0 : index
    %393 = vector.load %arg13[%392, %c0_101] : memref<64x32xf32, #tpu.memory_space<vmem>>, vector<8x32xf32>
    tpu.vector_store %arg13[%392, %c0_101], %391 {strides = array<i32>} : memref<64x32xf32, #tpu.memory_space<vmem>>, vector<8x32xf32>,
    %c3_i32_102 = arith.constant 3 : i32
    %c8_i32_103 = arith.constant 8 : i32
    %394 = arith.muli %c3_i32_102, %c8_i32_103 : i32
    %395 = tpu.assume_multiple %394, 8 : i32
    %396 = arith.index_cast %395 : i32 to index
    %c0_104 = arith.constant 0 : index
    %397 = vector.load %arg12[%396, %c0_104] : memref<64x128xf32, #tpu.memory_space<vmem>>, vector<8x128xf32>
    %398 = arith.truncf %391 : vector<8x32xf32> to vector<8x32xbf16>
    %cst_105 = arith.constant dense<0.000000e+00> : vector<8x128xf32>
    %399 = tpu.matmul %398, %290, %cst_105 {dimension_numbers = #tpu.dot_dimension_numbers<[1], [0], [0], [1], [0, 0, 1, 1], [], []>} : vector<8x32xbf16>, vector<32x128xbf16>, vector<8x128xf32> -> vector<8x128xf32>
    %400 = arith.addf %397, %399 : vector<8x128xf32>
    %401 = vector.extract_strided_slice %400 {offsets = [0, 0], sizes = [8, 32], strides = [1, 1]} : vector<8x128xf32> to vector<8x32xf32>
    %402 = arith.negf %401 : vector<8x32xf32>
    %403 = math.exp %402 : vector<8x32xf32>
    %cst_106 = arith.constant 1.000000e+00 : f32
    %404 = vector.broadcast %cst_106 : f32 to vector<8x32xf32>
    %405 = arith.addf %404, %403 : vector<8x32xf32>
    %406 = arith.divf %404, %405 : vector<8x32xf32>
    %407 = vector.extract_strided_slice %400 {offsets = [0, 32], sizes = [8, 32], strides = [1, 1]} : vector<8x128xf32> to vector<8x32xf32>
    %408 = arith.negf %407 : vector<8x32xf32>
    %409 = math.exp %408 : vector<8x32xf32>
    %cst_107 = arith.constant 1.000000e+00 : f32
    %410 = vector.broadcast %cst_107 : f32 to vector<8x32xf32>
    %411 = arith.addf %410, %409 : vector<8x32xf32>
    %412 = arith.divf %410, %411 : vector<8x32xf32>
    %413 = vector.extract_strided_slice %400 {offsets = [0, 64], sizes = [8, 32], strides = [1, 1]} : vector<8x128xf32> to vector<8x32xf32>
    %414 = math.tanh %413 : vector<8x32xf32>
    %415 = vector.extract_strided_slice %400 {offsets = [0, 96], sizes = [8, 32], strides = [1, 1]} : vector<8x128xf32> to vector<8x32xf32>
    %416 = arith.negf %415 : vector<8x32xf32>
    %417 = math.exp %416 : vector<8x32xf32>
    %cst_108 = arith.constant 1.000000e+00 : f32
    %418 = vector.broadcast %cst_108 : f32 to vector<8x32xf32>
    %419 = arith.addf %418, %417 : vector<8x32xf32>
    %420 = arith.divf %418, %419 : vector<8x32xf32>
    %421 = arith.mulf %412, %389 : vector<8x32xf32>
    %422 = arith.mulf %406, %414 : vector<8x32xf32>
    %423 = arith.addf %421, %422 : vector<8x32xf32>
    %424 = math.tanh %423 : vector<8x32xf32>
    %425 = arith.mulf %420, %424 : vector<8x32xf32>
    %426 = arith.index_cast %395 : i32 to index
    %c0_109 = arith.constant 0 : index
    %427 = vector.load %arg13[%426, %c0_109] : memref<64x32xf32, #tpu.memory_space<vmem>>, vector<8x32xf32>
    tpu.vector_store %arg13[%426, %c0_109], %425 {strides = array<i32>} : memref<64x32xf32, #tpu.memory_space<vmem>>, vector<8x32xf32>,
    %c4_i32_110 = arith.constant 4 : i32
    %c8_i32_111 = arith.constant 8 : i32
    %428 = arith.muli %c4_i32_110, %c8_i32_111 : i32
    %429 = tpu.assume_multiple %428, 8 : i32
    %430 = arith.index_cast %429 : i32 to index
    %c0_112 = arith.constant 0 : index
    %431 = vector.load %arg12[%430, %c0_112] : memref<64x128xf32, #tpu.memory_space<vmem>>, vector<8x128xf32>
    %432 = arith.truncf %425 : vector<8x32xf32> to vector<8x32xbf16>
    %cst_113 = arith.constant dense<0.000000e+00> : vector<8x128xf32>
    %433 = tpu.matmul %432, %290, %cst_113 {dimension_numbers = #tpu.dot_dimension_numbers<[1], [0], [0], [1], [0, 0, 1, 1], [], []>} : vector<8x32xbf16>, vector<32x128xbf16>, vector<8x128xf32> -> vector<8x128xf32>
    %434 = arith.addf %431, %433 : vector<8x128xf32>
    %435 = vector.extract_strided_slice %434 {offsets = [0, 0], sizes = [8, 32], strides = [1, 1]} : vector<8x128xf32> to vector<8x32xf32>
    %436 = arith.negf %435 : vector<8x32xf32>
    %437 = math.exp %436 : vector<8x32xf32>
    %cst_114 = arith.constant 1.000000e+00 : f32
    %438 = vector.broadcast %cst_114 : f32 to vector<8x32xf32>
    %439 = arith.addf %438, %437 : vector<8x32xf32>
    %440 = arith.divf %438, %439 : vector<8x32xf32>
    %441 = vector.extract_strided_slice %434 {offsets = [0, 32], sizes = [8, 32], strides = [1, 1]} : vector<8x128xf32> to vector<8x32xf32>
    %442 = arith.negf %441 : vector<8x32xf32>
    %443 = math.exp %442 : vector<8x32xf32>
    %cst_115 = arith.constant 1.000000e+00 : f32
    %444 = vector.broadcast %cst_115 : f32 to vector<8x32xf32>
    %445 = arith.addf %444, %443 : vector<8x32xf32>
    %446 = arith.divf %444, %445 : vector<8x32xf32>
    %447 = vector.extract_strided_slice %434 {offsets = [0, 64], sizes = [8, 32], strides = [1, 1]} : vector<8x128xf32> to vector<8x32xf32>
    %448 = math.tanh %447 : vector<8x32xf32>
    %449 = vector.extract_strided_slice %434 {offsets = [0, 96], sizes = [8, 32], strides = [1, 1]} : vector<8x128xf32> to vector<8x32xf32>
    %450 = arith.negf %449 : vector<8x32xf32>
    %451 = math.exp %450 : vector<8x32xf32>
    %cst_116 = arith.constant 1.000000e+00 : f32
    %452 = vector.broadcast %cst_116 : f32 to vector<8x32xf32>
    %453 = arith.addf %452, %451 : vector<8x32xf32>
    %454 = arith.divf %452, %453 : vector<8x32xf32>
    %455 = arith.mulf %446, %423 : vector<8x32xf32>
    %456 = arith.mulf %440, %448 : vector<8x32xf32>
    %457 = arith.addf %455, %456 : vector<8x32xf32>
    %458 = math.tanh %457 : vector<8x32xf32>
    %459 = arith.mulf %454, %458 : vector<8x32xf32>
    %460 = arith.index_cast %429 : i32 to index
    %c0_117 = arith.constant 0 : index
    %461 = vector.load %arg13[%460, %c0_117] : memref<64x32xf32, #tpu.memory_space<vmem>>, vector<8x32xf32>
    tpu.vector_store %arg13[%460, %c0_117], %459 {strides = array<i32>} : memref<64x32xf32, #tpu.memory_space<vmem>>, vector<8x32xf32>,
    %c5_i32_118 = arith.constant 5 : i32
    %c8_i32_119 = arith.constant 8 : i32
    %462 = arith.muli %c5_i32_118, %c8_i32_119 : i32
    %463 = tpu.assume_multiple %462, 8 : i32
    %464 = arith.index_cast %463 : i32 to index
    %c0_120 = arith.constant 0 : index
    %465 = vector.load %arg12[%464, %c0_120] : memref<64x128xf32, #tpu.memory_space<vmem>>, vector<8x128xf32>
    %466 = arith.truncf %459 : vector<8x32xf32> to vector<8x32xbf16>
    %cst_121 = arith.constant dense<0.000000e+00> : vector<8x128xf32>
    %467 = tpu.matmul %466, %290, %cst_121 {dimension_numbers = #tpu.dot_dimension_numbers<[1], [0], [0], [1], [0, 0, 1, 1], [], []>} : vector<8x32xbf16>, vector<32x128xbf16>, vector<8x128xf32> -> vector<8x128xf32>
    %468 = arith.addf %465, %467 : vector<8x128xf32>
    %469 = vector.extract_strided_slice %468 {offsets = [0, 0], sizes = [8, 32], strides = [1, 1]} : vector<8x128xf32> to vector<8x32xf32>
    %470 = arith.negf %469 : vector<8x32xf32>
    %471 = math.exp %470 : vector<8x32xf32>
    %cst_122 = arith.constant 1.000000e+00 : f32
    %472 = vector.broadcast %cst_122 : f32 to vector<8x32xf32>
    %473 = arith.addf %472, %471 : vector<8x32xf32>
    %474 = arith.divf %472, %473 : vector<8x32xf32>
    %475 = vector.extract_strided_slice %468 {offsets = [0, 32], sizes = [8, 32], strides = [1, 1]} : vector<8x128xf32> to vector<8x32xf32>
    %476 = arith.negf %475 : vector<8x32xf32>
    %477 = math.exp %476 : vector<8x32xf32>
    %cst_123 = arith.constant 1.000000e+00 : f32
    %478 = vector.broadcast %cst_123 : f32 to vector<8x32xf32>
    %479 = arith.addf %478, %477 : vector<8x32xf32>
    %480 = arith.divf %478, %479 : vector<8x32xf32>
    %481 = vector.extract_strided_slice %468 {offsets = [0, 64], sizes = [8, 32], strides = [1, 1]} : vector<8x128xf32> to vector<8x32xf32>
    %482 = math.tanh %481 : vector<8x32xf32>
    %483 = vector.extract_strided_slice %468 {offsets = [0, 96], sizes = [8, 32], strides = [1, 1]} : vector<8x128xf32> to vector<8x32xf32>
    %484 = arith.negf %483 : vector<8x32xf32>
    %485 = math.exp %484 : vector<8x32xf32>
    %cst_124 = arith.constant 1.000000e+00 : f32
    %486 = vector.broadcast %cst_124 : f32 to vector<8x32xf32>
    %487 = arith.addf %486, %485 : vector<8x32xf32>
    %488 = arith.divf %486, %487 : vector<8x32xf32>
    %489 = arith.mulf %480, %457 : vector<8x32xf32>
    %490 = arith.mulf %474, %482 : vector<8x32xf32>
    %491 = arith.addf %489, %490 : vector<8x32xf32>
    %492 = math.tanh %491 : vector<8x32xf32>
    %493 = arith.mulf %488, %492 : vector<8x32xf32>
    %494 = arith.index_cast %463 : i32 to index
    %c0_125 = arith.constant 0 : index
    %495 = vector.load %arg13[%494, %c0_125] : memref<64x32xf32, #tpu.memory_space<vmem>>, vector<8x32xf32>
    tpu.vector_store %arg13[%494, %c0_125], %493 {strides = array<i32>} : memref<64x32xf32, #tpu.memory_space<vmem>>, vector<8x32xf32>,
    %c6_i32_126 = arith.constant 6 : i32
    %c8_i32_127 = arith.constant 8 : i32
    %496 = arith.muli %c6_i32_126, %c8_i32_127 : i32
    %497 = tpu.assume_multiple %496, 8 : i32
    %498 = arith.index_cast %497 : i32 to index
    %c0_128 = arith.constant 0 : index
    %499 = vector.load %arg12[%498, %c0_128] : memref<64x128xf32, #tpu.memory_space<vmem>>, vector<8x128xf32>
    %500 = arith.truncf %493 : vector<8x32xf32> to vector<8x32xbf16>
    %cst_129 = arith.constant dense<0.000000e+00> : vector<8x128xf32>
    %501 = tpu.matmul %500, %290, %cst_129 {dimension_numbers = #tpu.dot_dimension_numbers<[1], [0], [0], [1], [0, 0, 1, 1], [], []>} : vector<8x32xbf16>, vector<32x128xbf16>, vector<8x128xf32> -> vector<8x128xf32>
    %502 = arith.addf %499, %501 : vector<8x128xf32>
    %503 = vector.extract_strided_slice %502 {offsets = [0, 0], sizes = [8, 32], strides = [1, 1]} : vector<8x128xf32> to vector<8x32xf32>
    %504 = arith.negf %503 : vector<8x32xf32>
    %505 = math.exp %504 : vector<8x32xf32>
    %cst_130 = arith.constant 1.000000e+00 : f32
    %506 = vector.broadcast %cst_130 : f32 to vector<8x32xf32>
    %507 = arith.addf %506, %505 : vector<8x32xf32>
    %508 = arith.divf %506, %507 : vector<8x32xf32>
    %509 = vector.extract_strided_slice %502 {offsets = [0, 32], sizes = [8, 32], strides = [1, 1]} : vector<8x128xf32> to vector<8x32xf32>
    %510 = arith.negf %509 : vector<8x32xf32>
    %511 = math.exp %510 : vector<8x32xf32>
    %cst_131 = arith.constant 1.000000e+00 : f32
    %512 = vector.broadcast %cst_131 : f32 to vector<8x32xf32>
    %513 = arith.addf %512, %511 : vector<8x32xf32>
    %514 = arith.divf %512, %513 : vector<8x32xf32>
    %515 = vector.extract_strided_slice %502 {offsets = [0, 64], sizes = [8, 32], strides = [1, 1]} : vector<8x128xf32> to vector<8x32xf32>
    %516 = math.tanh %515 : vector<8x32xf32>
    %517 = vector.extract_strided_slice %502 {offsets = [0, 96], sizes = [8, 32], strides = [1, 1]} : vector<8x128xf32> to vector<8x32xf32>
    %518 = arith.negf %517 : vector<8x32xf32>
    %519 = math.exp %518 : vector<8x32xf32>
    %cst_132 = arith.constant 1.000000e+00 : f32
    %520 = vector.broadcast %cst_132 : f32 to vector<8x32xf32>
    %521 = arith.addf %520, %519 : vector<8x32xf32>
    %522 = arith.divf %520, %521 : vector<8x32xf32>
    %523 = arith.mulf %514, %491 : vector<8x32xf32>
    %524 = arith.mulf %508, %516 : vector<8x32xf32>
    %525 = arith.addf %523, %524 : vector<8x32xf32>
    %526 = math.tanh %525 : vector<8x32xf32>
    %527 = arith.mulf %522, %526 : vector<8x32xf32>
    %528 = arith.index_cast %497 : i32 to index
    %c0_133 = arith.constant 0 : index
    %529 = vector.load %arg13[%528, %c0_133] : memref<64x32xf32, #tpu.memory_space<vmem>>, vector<8x32xf32>
    tpu.vector_store %arg13[%528, %c0_133], %527 {strides = array<i32>} : memref<64x32xf32, #tpu.memory_space<vmem>>, vector<8x32xf32>,
    %c7_i32_134 = arith.constant 7 : i32
    %c8_i32_135 = arith.constant 8 : i32
    %530 = arith.muli %c7_i32_134, %c8_i32_135 : i32
    %531 = tpu.assume_multiple %530, 8 : i32
    %532 = arith.index_cast %531 : i32 to index
    %c0_136 = arith.constant 0 : index
    %533 = vector.load %arg12[%532, %c0_136] : memref<64x128xf32, #tpu.memory_space<vmem>>, vector<8x128xf32>
    %534 = arith.truncf %527 : vector<8x32xf32> to vector<8x32xbf16>
    %cst_137 = arith.constant dense<0.000000e+00> : vector<8x128xf32>
    %535 = tpu.matmul %534, %290, %cst_137 {dimension_numbers = #tpu.dot_dimension_numbers<[1], [0], [0], [1], [0, 0, 1, 1], [], []>} : vector<8x32xbf16>, vector<32x128xbf16>, vector<8x128xf32> -> vector<8x128xf32>
    %536 = arith.addf %533, %535 : vector<8x128xf32>
    %537 = vector.extract_strided_slice %536 {offsets = [0, 0], sizes = [8, 32], strides = [1, 1]} : vector<8x128xf32> to vector<8x32xf32>
    %538 = arith.negf %537 : vector<8x32xf32>
    %539 = math.exp %538 : vector<8x32xf32>
    %cst_138 = arith.constant 1.000000e+00 : f32
    %540 = vector.broadcast %cst_138 : f32 to vector<8x32xf32>
    %541 = arith.addf %540, %539 : vector<8x32xf32>
    %542 = arith.divf %540, %541 : vector<8x32xf32>
    %543 = vector.extract_strided_slice %536 {offsets = [0, 32], sizes = [8, 32], strides = [1, 1]} : vector<8x128xf32> to vector<8x32xf32>
    %544 = arith.negf %543 : vector<8x32xf32>
    %545 = math.exp %544 : vector<8x32xf32>
    %cst_139 = arith.constant 1.000000e+00 : f32
    %546 = vector.broadcast %cst_139 : f32 to vector<8x32xf32>
    %547 = arith.addf %546, %545 : vector<8x32xf32>
    %548 = arith.divf %546, %547 : vector<8x32xf32>
    %549 = vector.extract_strided_slice %536 {offsets = [0, 64], sizes = [8, 32], strides = [1, 1]} : vector<8x128xf32> to vector<8x32xf32>
    %550 = math.tanh %549 : vector<8x32xf32>
    %551 = vector.extract_strided_slice %536 {offsets = [0, 96], sizes = [8, 32], strides = [1, 1]} : vector<8x128xf32> to vector<8x32xf32>
    %552 = arith.negf %551 : vector<8x32xf32>
    %553 = math.exp %552 : vector<8x32xf32>
    %cst_140 = arith.constant 1.000000e+00 : f32
    %554 = vector.broadcast %cst_140 : f32 to vector<8x32xf32>
    %555 = arith.addf %554, %553 : vector<8x32xf32>
    %556 = arith.divf %554, %555 : vector<8x32xf32>
    %557 = arith.mulf %548, %525 : vector<8x32xf32>
    %558 = arith.mulf %542, %550 : vector<8x32xf32>
    %559 = arith.addf %557, %558 : vector<8x32xf32>
    %560 = math.tanh %559 : vector<8x32xf32>
    %561 = arith.mulf %556, %560 : vector<8x32xf32>
    %562 = arith.index_cast %531 : i32 to index
    %c0_141 = arith.constant 0 : index
    %563 = vector.load %arg13[%562, %c0_141] : memref<64x32xf32, #tpu.memory_space<vmem>>, vector<8x32xf32>
    tpu.vector_store %arg13[%562, %c0_141], %561 {strides = array<i32>} : memref<64x32xf32, #tpu.memory_space<vmem>>, vector<8x32xf32>,
    %c8_i32_142 = arith.constant 8 : i32
    %c0_143 = arith.constant 0 : index
    %c0_144 = arith.constant 0 : index
    %564 = vector.load %arg13[%c0_143, %c0_144] : memref<64x32xf32, #tpu.memory_space<vmem>>, vector<64x32xf32>
    %c0_145 = arith.constant 0 : index
    %c0_146 = arith.constant 0 : index
    %565 = vector.load %arg7[%c0_145, %c0_146] : memref<32x32xbf16, #tpu.memory_space<vmem>>, vector<32x32xbf16>
    %566 = arith.truncf %564 : vector<64x32xf32> to vector<64x32xbf16>
    %cst_147 = arith.constant dense<0.000000e+00> : vector<64x32xf32>
    %567 = tpu.matmul %566, %565, %cst_147 {dimension_numbers = #tpu.dot_dimension_numbers<[1], [0], [0], [1], [0, 0, 1, 1], [], []>} : vector<64x32xbf16>, vector<32x32xbf16>, vector<64x32xf32> -> vector<64x32xf32>
    %c0_148 = arith.constant 0 : index
    %c0_149 = arith.constant 0 : index
    %568 = vector.load %arg8[%c0_148, %c0_149] : memref<1x32xf32, #tpu.memory_space<vmem>>, vector<1x32xf32>
    %569 = vector.broadcast %568 : vector<1x32xf32> to vector<64x32xf32>
    %570 = arith.addf %567, %569 : vector<64x32xf32>
    %cst_150 = arith.constant 0.000000e+00 : f32
    %571 = vector.broadcast %cst_150 : f32 to vector<64x32xf32>
    %572 = arith.maximumf %570, %571 : vector<64x32xf32>
    %573 = math.tanh %572 : vector<64x32xf32>
    %574 = arith.mulf %572, %573 : vector<64x32xf32>
    %575 = vector.extract_strided_slice %574 {offsets = [0, 0], sizes = [8, 32], strides = [1, 1]} : vector<64x32xf32> to vector<8x32xf32>
    %c0_151 = arith.constant 0 : index
    %c0_152 = arith.constant 0 : index
    %c0_153 = arith.constant 0 : index
    %576 = vector.load %arg9[%c0_151, %c0_152, %c0_153] : memref<8x32x9xbf16, #tpu.memory_space<vmem>>, vector<1x32x9xbf16>
    %577 = vector.shape_cast %576 : vector<1x32x9xbf16> to vector<32x9xbf16>
    %578 = arith.truncf %575 : vector<8x32xf32> to vector<8x32xbf16>
    %cst_154 = arith.constant dense<0.000000e+00> : vector<8x9xf32>
    %579 = tpu.matmul %578, %577, %cst_154 {dimension_numbers = #tpu.dot_dimension_numbers<[1], [0], [0], [1], [0, 0, 1, 1], [], []>} : vector<8x32xbf16>, vector<32x9xbf16>, vector<8x9xf32> -> vector<8x9xf32>
    %580 = vector.extract_strided_slice %574 {offsets = [8, 0], sizes = [8, 32], strides = [1, 1]} : vector<64x32xf32> to vector<8x32xf32>
    %c1 = arith.constant 1 : index
    %c0_155 = arith.constant 0 : index
    %c0_156 = arith.constant 0 : index
    %581 = vector.load %arg9[%c1, %c0_155, %c0_156] : memref<8x32x9xbf16, #tpu.memory_space<vmem>>, vector<1x32x9xbf16>
    %582 = vector.shape_cast %581 : vector<1x32x9xbf16> to vector<32x9xbf16>
    %583 = arith.truncf %580 : vector<8x32xf32> to vector<8x32xbf16>
    %cst_157 = arith.constant dense<0.000000e+00> : vector<8x9xf32>
    %584 = tpu.matmul %583, %582, %cst_157 {dimension_numbers = #tpu.dot_dimension_numbers<[1], [0], [0], [1], [0, 0, 1, 1], [], []>} : vector<8x32xbf16>, vector<32x9xbf16>, vector<8x9xf32> -> vector<8x9xf32>
    %585 = arith.addf %579, %584 : vector<8x9xf32>
    %586 = vector.extract_strided_slice %574 {offsets = [16, 0], sizes = [8, 32], strides = [1, 1]} : vector<64x32xf32> to vector<8x32xf32>
    %c2 = arith.constant 2 : index
    %c0_158 = arith.constant 0 : index
    %c0_159 = arith.constant 0 : index
    %587 = vector.load %arg9[%c2, %c0_158, %c0_159] : memref<8x32x9xbf16, #tpu.memory_space<vmem>>, vector<1x32x9xbf16>
    %588 = vector.shape_cast %587 : vector<1x32x9xbf16> to vector<32x9xbf16>
    %589 = arith.truncf %586 : vector<8x32xf32> to vector<8x32xbf16>
    %cst_160 = arith.constant dense<0.000000e+00> : vector<8x9xf32>
    %590 = tpu.matmul %589, %588, %cst_160 {dimension_numbers = #tpu.dot_dimension_numbers<[1], [0], [0], [1], [0, 0, 1, 1], [], []>} : vector<8x32xbf16>, vector<32x9xbf16>, vector<8x9xf32> -> vector<8x9xf32>
    %591 = arith.addf %585, %590 : vector<8x9xf32>
    %592 = vector.extract_strided_slice %574 {offsets = [24, 0], sizes = [8, 32], strides = [1, 1]} : vector<64x32xf32> to vector<8x32xf32>
    %c3 = arith.constant 3 : index
    %c0_161 = arith.constant 0 : index
    %c0_162 = arith.constant 0 : index
    %593 = vector.load %arg9[%c3, %c0_161, %c0_162] : memref<8x32x9xbf16, #tpu.memory_space<vmem>>, vector<1x32x9xbf16>
    %594 = vector.shape_cast %593 : vector<1x32x9xbf16> to vector<32x9xbf16>
    %595 = arith.truncf %592 : vector<8x32xf32> to vector<8x32xbf16>
    %cst_163 = arith.constant dense<0.000000e+00> : vector<8x9xf32>
    %596 = tpu.matmul %595, %594, %cst_163 {dimension_numbers = #tpu.dot_dimension_numbers<[1], [0], [0], [1], [0, 0, 1, 1], [], []>} : vector<8x32xbf16>, vector<32x9xbf16>, vector<8x9xf32> -> vector<8x9xf32>
    %597 = arith.addf %591, %596 : vector<8x9xf32>
    %598 = vector.extract_strided_slice %574 {offsets = [32, 0], sizes = [8, 32], strides = [1, 1]} : vector<64x32xf32> to vector<8x32xf32>
    %c4 = arith.constant 4 : index
    %c0_164 = arith.constant 0 : index
    %c0_165 = arith.constant 0 : index
    %599 = vector.load %arg9[%c4, %c0_164, %c0_165] : memref<8x32x9xbf16, #tpu.memory_space<vmem>>, vector<1x32x9xbf16>
    %600 = vector.shape_cast %599 : vector<1x32x9xbf16> to vector<32x9xbf16>
    %601 = arith.truncf %598 : vector<8x32xf32> to vector<8x32xbf16>
    %cst_166 = arith.constant dense<0.000000e+00> : vector<8x9xf32>
    %602 = tpu.matmul %601, %600, %cst_166 {dimension_numbers = #tpu.dot_dimension_numbers<[1], [0], [0], [1], [0, 0, 1, 1], [], []>} : vector<8x32xbf16>, vector<32x9xbf16>, vector<8x9xf32> -> vector<8x9xf32>
    %603 = arith.addf %597, %602 : vector<8x9xf32>
    %604 = vector.extract_strided_slice %574 {offsets = [40, 0], sizes = [8, 32], strides = [1, 1]} : vector<64x32xf32> to vector<8x32xf32>
    %c5 = arith.constant 5 : index
    %c0_167 = arith.constant 0 : index
    %c0_168 = arith.constant 0 : index
    %605 = vector.load %arg9[%c5, %c0_167, %c0_168] : memref<8x32x9xbf16, #tpu.memory_space<vmem>>, vector<1x32x9xbf16>
    %606 = vector.shape_cast %605 : vector<1x32x9xbf16> to vector<32x9xbf16>
    %607 = arith.truncf %604 : vector<8x32xf32> to vector<8x32xbf16>
    %cst_169 = arith.constant dense<0.000000e+00> : vector<8x9xf32>
    %608 = tpu.matmul %607, %606, %cst_169 {dimension_numbers = #tpu.dot_dimension_numbers<[1], [0], [0], [1], [0, 0, 1, 1], [], []>} : vector<8x32xbf16>, vector<32x9xbf16>, vector<8x9xf32> -> vector<8x9xf32>
    %609 = arith.addf %603, %608 : vector<8x9xf32>
    %610 = vector.extract_strided_slice %574 {offsets = [48, 0], sizes = [8, 32], strides = [1, 1]} : vector<64x32xf32> to vector<8x32xf32>
    %c6 = arith.constant 6 : index
    %c0_170 = arith.constant 0 : index
    %c0_171 = arith.constant 0 : index
    %611 = vector.load %arg9[%c6, %c0_170, %c0_171] : memref<8x32x9xbf16, #tpu.memory_space<vmem>>, vector<1x32x9xbf16>
    %612 = vector.shape_cast %611 : vector<1x32x9xbf16> to vector<32x9xbf16>
    %613 = arith.truncf %610 : vector<8x32xf32> to vector<8x32xbf16>
    %cst_172 = arith.constant dense<0.000000e+00> : vector<8x9xf32>
    %614 = tpu.matmul %613, %612, %cst_172 {dimension_numbers = #tpu.dot_dimension_numbers<[1], [0], [0], [1], [0, 0, 1, 1], [], []>} : vector<8x32xbf16>, vector<32x9xbf16>, vector<8x9xf32> -> vector<8x9xf32>
    %615 = arith.addf %609, %614 : vector<8x9xf32>
    %616 = vector.extract_strided_slice %574 {offsets = [56, 0], sizes = [8, 32], strides = [1, 1]} : vector<64x32xf32> to vector<8x32xf32>
    %c7 = arith.constant 7 : index
    %c0_173 = arith.constant 0 : index
    %c0_174 = arith.constant 0 : index
    %617 = vector.load %arg9[%c7, %c0_173, %c0_174] : memref<8x32x9xbf16, #tpu.memory_space<vmem>>, vector<1x32x9xbf16>
    %618 = vector.shape_cast %617 : vector<1x32x9xbf16> to vector<32x9xbf16>
    %619 = arith.truncf %616 : vector<8x32xf32> to vector<8x32xbf16>
    %cst_175 = arith.constant dense<0.000000e+00> : vector<8x9xf32>
    %620 = tpu.matmul %619, %618, %cst_175 {dimension_numbers = #tpu.dot_dimension_numbers<[1], [0], [0], [1], [0, 0, 1, 1], [], []>} : vector<8x32xbf16>, vector<32x9xbf16>, vector<8x9xf32> -> vector<8x9xf32>
    %621 = arith.addf %615, %620 : vector<8x9xf32>
    %c0_176 = arith.constant 0 : index
    %c0_177 = arith.constant 0 : index
    %622 = vector.load %arg10[%c0_176, %c0_177] : memref<1x9xf32, #tpu.memory_space<vmem>>, vector<1x9xf32>
    %623 = vector.broadcast %622 : vector<1x9xf32> to vector<8x9xf32>
    %624 = arith.addf %621, %623 : vector<8x9xf32>
    %c0_178 = arith.constant 0 : index
    %c0_179 = arith.constant 0 : index
    %625 = vector.load %arg11[%c0_178, %c0_179] : memref<8x9xf32, #tpu.memory_space<vmem>>, vector<8x9xf32>
    tpu.vector_store %arg11[%c0_178, %c0_179], %624 {strides = array<i32>} : memref<8x9xf32, #tpu.memory_space<vmem>>, vector<8x9xf32>,
    return
  }
}

</mosaic_0001>

<llo_original>
// kernel: _lambda_.1
$region0: #{_lambda_.1}
  #allocation0 [shape = 'u32[]', space=smem, size = 0x4, offset = 0x4, fixed_abs, tag = 'smem constant byte address 0x4 - core index']
  #allocation1 [shape = 'u32[72,128]{1,0:T(1,128)}', space=vmem, size = 0x9000, scoped, tag = 'internal scratch']
  #allocation2 [shape = 'f32[64,128]{1,0:T(8,128)}', space=vmem, size = 0x8000, scoped, tag = 'scratch operand']
  #allocation3 [shape = 'f32[64,32]{1,0:T(8,128)}', space=vmem, size = 0x8000, scoped, tag = 'scratch operand']
  %s0 = inlined_call_operand.vmem [shape: f32[64,4], index: 0, kind: input, shape index: {}]
  %s1 = inlined_call_operand.hbm [shape: bf16[4,128], index: 1, kind: input, shape index: {}]
  %s2 = inlined_call_operand.vmem [shape: bf16[32,128], index: 2, kind: input, shape index: {}]
  %s3 = inlined_call_operand.vmem [shape: f32[1,128], index: 3, kind: input, shape index: {}]
  %s4 = inlined_call_operand.vmem [shape: bf16[32,128], index: 4, kind: input, shape index: {}]
  %s5 = inlined_call_operand.vmem [shape: bf16[32,128], index: 5, kind: input, shape index: {}]
  %s6 = inlined_call_operand.vmem [shape: f32[1,128], index: 6, kind: input, shape index: {}]
  %s7 = inlined_call_operand.vmem [shape: bf16[32,32], index: 7, kind: input, shape index: {}]
  %s8 = inlined_call_operand.vmem [shape: f32[1,32], index: 8, kind: input, shape index: {}]
  %s9 = inlined_call_operand.vmem [shape: bf16[8,32,9], index: 9, kind: input, shape index: {}]
  %s10 = inlined_call_operand.vmem [shape: f32[1,9], index: 10, kind: input, shape index: {}]
  %s11 = inlined_call_operand.vmem [shape: f32[8,9], index: 11, kind: output, shape index: {}]
  %s12 = sld [smem:[#allocation0]]
  $region58: #{_lambda_.1} parent=0
    _
  %s14 = ssub.s32 1, %s12
  %s15 = scalar_select 0, %s14, %s12
  $region1: #{_lambda_.1} parent=0
    #allocation4 [shape = 'u8[1024]{0}', space=vmem, size = 0x400, scoped, tag = 'input window, operand 1, single buffered']
    #allocation5 [shape = 's32[1]{0}', space=sflag, size = 0x4, scoped, tag = 'scoped memory for _lambda_.1']
    %16 = vsyncpa [#allocation5], 0
    // Predicated region
    $region2: #{_lambda_.1} parent=1 // pred_check
      _
    $region3: #{_lambda_.1} parent=1 // pred_check_branch
      %18 = sbr.rel (0) target = $region5
    $region4: #{_lambda_.1} parent=1 // pred_region
      _
    $region5: #{_lambda_.1} parent=1 // pred_fallthru
      _
    // Predicated region
    $region6: #{_lambda_.1} parent=1 // pred_check
      _
    $region7: #{_lambda_.1} parent=1 // pred_check_branch
      %20 = sbr.rel (0) target = $region9
    $region8: #{_lambda_.1} parent=1 // pred_region
      %22 = vsyncadd [#allocation5], 0
      %s24 = sshll.u32 %s1, 4
      %s25 = int_to_ptr.hbm [resolvable:$true] %s24
      %s26 = sshll.u32 [#allocation4], 4
      %s27 = int_to_ptr.vmem [resolvable:$true] %s26
      %29 = dma.hbm_to_vmem [thread:$0]  %s25, 32, %s27, [#allocation5]
    $region9: #{_lambda_.1} parent=1 // pred_fallthru
      _
    // Predicated region
    $region10: #{_lambda_.1} parent=1 // pred_check
      _
    $region11: #{_lambda_.1} parent=1 // pred_check_branch
      %31 = sbr.rel (0) target = $region13
    $region12: #{_lambda_.1} parent=1 // pred_region
      _
    $region13: #{_lambda_.1} parent=1 // pred_fallthru
      _
    // Predicated region
    $region14: #{_lambda_.1} parent=1 // pred_check
      _
    $region15: #{_lambda_.1} parent=1 // pred_check_branch
      %33 = sbr.rel (0) target = $region17
    $region16: #{_lambda_.1} parent=1 // pred_region
      _
    $region17: #{_lambda_.1} parent=1 // pred_fallthru
      _
    // Predicated region
    $region18: #{_lambda_.1} parent=1 // pred_check
      _
    $region19: #{_lambda_.1} parent=1 // pred_check_branch
      %35 = sbr.rel (0) target = $region21
    $region20: #{_lambda_.1} parent=1 // pred_region
      _
    $region21: #{_lambda_.1} parent=1 // pred_fallthru
      _
    // Predicated region
    $region22: #{_lambda_.1} parent=1 // pred_check
      _
    $region23: #{_lambda_.1} parent=1 // pred_check_branch
      %37 = sbr.rel (0) target = $region25
    $region24: #{_lambda_.1} parent=1 // pred_region
      _
    $region25: #{_lambda_.1} parent=1 // pred_fallthru
      _
    // Predicated region
    $region26: #{_lambda_.1} parent=1 // pred_check
      _
    $region27: #{_lambda_.1} parent=1 // pred_check_branch
      %39 = sbr.rel (0) target = $region29
    $region28: #{_lambda_.1} parent=1 // pred_region
      _
    $region29: #{_lambda_.1} parent=1 // pred_fallthru
      _
    // Predicated region
    $region30: #{_lambda_.1} parent=1 // pred_check
      _
    $region31: #{_lambda_.1} parent=1 // pred_check_branch
      %41 = sbr.rel (0) target = $region33
    $region32: #{_lambda_.1} parent=1 // pred_region
      _
    $region33: #{_lambda_.1} parent=1 // pred_fallthru
      _
    // Predicated region
    $region34: #{_lambda_.1} parent=1 // pred_check
      _
    $region35: #{_lambda_.1} parent=1 // pred_check_branch
      %43 = sbr.rel (0) target = $region37
    $region36: #{_lambda_.1} parent=1 // pred_region
      _
    $region37: #{_lambda_.1} parent=1 // pred_fallthru
      _
    // Predicated region
    $region38: #{_lambda_.1} parent=1 // pred_check
      _
    $region39: #{_lambda_.1} parent=1 // pred_check_branch
      %45 = sbr.rel (0) target = $region41
    $region40: #{_lambda_.1} parent=1 // pred_region
      _
    $region41: #{_lambda_.1} parent=1 // pred_fallthru
      _
    // Predicated region
    $region42: #{_lambda_.1} parent=1 // pred_check
      _
    $region43: #{_lambda_.1} parent=1 // pred_check_branch
      %47 = sbr.rel (0) target = $region45
    $region44: #{_lambda_.1} parent=1 // pred_region
      _
    $region45: #{_lambda_.1} parent=1 // pred_fallthru
      _
    // Predicated region
    $region46: #{_lambda_.1} parent=1 // pred_check
      _
    $region47: #{_lambda_.1} parent=1 // pred_check_branch
      %49 = sbr.rel (0) target = $region49
    $region48: #{_lambda_.1} parent=1 // pred_region
      %51 = dma.done [#allocation5], 32
    $region49: #{_lambda_.1} parent=1 // pred_fallthru
      _
    %v53 = vld [vmem:[%s0] sm:$0xff]
    %v54 = vld [vmem:[%s0 + $0x8] sm:$0xff]
    %v55 = vld [vmem:[%s0 + $0x10] sm:$0xff]
    %v56 = vld [vmem:[%s0 + $0x18] sm:$0xff]
    %v57 = vld [vmem:[%s0 + $0x20] sm:$0xff]
    %v58 = vld [vmem:[%s0 + $0x28] sm:$0xff]
    %v59 = vld [vmem:[%s0 + $0x30] sm:$0xff]
    %v60 = vld [vmem:[%s0 + $0x38] sm:$0xff]
    %v61 = vld [vmem:[#allocation4] sm:$0x3]
    %v62 = vpack.c.bf16 %v54, %v53
    %v63 = vpack.c.bf16 %v56, %v55
    %v64 = vpack.c.bf16 %v58, %v57
    %v65 = vpack.c.bf16 %v60, %v59
    %v66 = vld [vmem:[%s3] sm:$0x1]
    %v68 = vperm.slane %v66, 0
    %vm70 = vcmask 31744
    %v72 = vsel %vm70, %v62, 0
    %v75 = vsel %vm70, %v63, 0
    %v78 = vsel %vm70, %v64, 0
    %v81 = vsel %vm70, %v65, 0
    %vm83 = vcmask 1041408
    %v85 = vsel %vm83, %v61, 0
    %87 = vmatpush.bf16.msra.mxu0 0
    %88 = vmatpush.bf16.msra.mxu0 0
    %89 = vmatpush.bf16.msra.mxu0 0
    %90 = vmatpush.bf16.msra.mxu0 0
    %91 = vmatpush.bf16.msra.mxu0 0
    %92 = vmatpush.bf16.msra.mxu0 0
    %93 = vmatpush.bf16.msra.mxu0 0
    %94 = vmatpush.bf16.msra.mxu0 %v85
    %95 = vmatmul.bf16.gmra.mxu0 %v72
    %v96 = vpop.f32.mrf.mxu0
    %v97 = vadd.f32 %v68, %v96
    %v98 = vpop.f32.mrf.mxu0
    %v99 = vadd.f32 %v68, %v98
    %100 = vmatmul.bf16.gmra.mxu0 %v75
    %v101 = vpop.f32.mrf.mxu0
    %v102 = vadd.f32 %v68, %v101
    %v103 = vpop.f32.mrf.mxu0
    %v104 = vadd.f32 %v68, %v103
    %105 = vmatmul.bf16.gmra.mxu0 %v78
    %v106 = vpop.f32.mrf.mxu0
    %v107 = vadd.f32 %v68, %v106
    %v108 = vpop.f32.mrf.mxu0
    %v109 = vadd.f32 %v68, %v108
    %110 = vmatmul.bf16.gmra.mxu0 %v81
    %v111 = vpop.f32.mrf.mxu0
    %v112 = vadd.f32 %v68, %v111
    %v113 = vpop.f32.mrf.mxu0
    %v114 = vadd.f32 %v68, %v113
    %115 = vdwg.mxu0
    %116 = vst [vmem:[#allocation2] sm:$0xff] %v97
    %117 = vst [vmem:[#allocation2 + $0x8] sm:$0xff] %v99
    %118 = vst [vmem:[#allocation2 + $0x10] sm:$0xff] %v102
    %119 = vst [vmem:[#allocation2 + $0x18] sm:$0xff] %v104
    %120 = vst [vmem:[#allocation2 + $0x20] sm:$0xff] %v107
    %121 = vst [vmem:[#allocation2 + $0x28] sm:$0xff] %v109
    %122 = vst [vmem:[#allocation2 + $0x30] sm:$0xff] %v112
    %123 = vst [vmem:[#allocation2 + $0x38] sm:$0xff] %v114
    %v124 = vld [vmem:[%s2] sm:$0xf]
    %v125 = vld [vmem:[%s2 + $0x4] sm:$0xf]
    %v126 = vld [vmem:[%s2 + $0x8] sm:$0xf]
    %v127 = vld [vmem:[%s2 + $0xc] sm:$0xf]
    %v128 = vld [vmem:[#allocation2] sm:$0xff]
    %v133 = vunpack.c.l.b16 %v124
    %v134 = vunpack.c.l.b16 %v125
    %v135 = vunpack.c.l.b16 %v126
    %v136 = vunpack.c.l.b16 %v127
    %v137 = vpack.c.b16 %v134, %v133
    %v138 = vpack.c.b16 %v136, %v135
    %vm141 = vcmask 261120
    %v143 = vsel %vm141, 0, 0
    %145 = vmatpush.bf16.msra.mxu0 0
    %146 = vmatpush.bf16.msra.mxu0 0
    %147 = vmatpush.bf16.msra.mxu0 0
    %148 = vmatpush.bf16.msra.mxu0 0
    %149 = vmatpush.bf16.msra.mxu0 0
    %150 = vmatpush.bf16.msra.mxu0 0
    %151 = vmatpush.bf16.msra.mxu0 %v138
    %152 = vmatpush.bf16.msra.mxu0 %v137
    %153 = vmatmul.bf16.gmra.mxu0 %v143
    %v154 = vpop.f32.mrf.mxu0
    %v155 = vadd.f32 0.0, %v154
    %v156 = vpop.f32.mrf.mxu0
    %157 = vdwg.mxu0
    %v158 = vadd.f32 %v128, %v155
    %v159 = vxor.u32 %v158, 2147483648
    %v160 = vmul.f32 %v159, 1.442695
    %v161 = vpow.pop %v160
    %v162 = vadd.f32 %v161, 1.0
    %v163 = vrcp.pop %v162
    %v164 = vmul.f32 %v162, %v163
    %v165 = vsub.f32 1.0, %v164
    %v166 = vmul.f32 %v163, %v165
    %v167 = vadd.f32 %v163, %v166
    %vm168 = vweird.f32 %v162
    %vm169 = vweird.f32 %v163
    %vm170 = vmor %vm168, %vm169
    %v171 = vsel %vm170, %v163, %v167
    %v172 = vand.u32 2147483647, %v162
    %vm173 = vcmp.eq.f32.partialorder %v172, 8.507059e+37
    %v174 = vand.u32 %v162, 2147483648
    %v175 = vor.u32 1.1754944e-38, %v174
    %v176 = vsel %vm173, %v175, %v171
    %v177 = vmul.f32 1.0, %v176
    %v178 = vtanh.pop %v158
    %v179 = vmul.f32 %v177, 0.0
    %181 = vrot.lane.b32.xlu0 %v178, 64
    %v182 = vpop.permute.xlu0 %181
    %v184 = vmul.f32 %v177, %v182
    %186 = vrot.lane.b32.xlu0 %v184, 32
    %v187 = vpop.permute.xlu0 %186
    %v189 = vadd.f32 %v179, %v187
    %v190 = vtanh.pop %v189
    %192 = vrot.lane.b32.xlu0 %v190, 64
    %v193 = vpop.permute.xlu0 %192
    %v195 = vmul.f32 %v177, %v193
    %197 = vrot.lane.b32.xlu0 %v195, 32
    %v198 = vpop.permute.xlu0 %197
    %200 = vst.msk [vmem:[#allocation3] sm:$0xff] %vm141, %v198
    %s201 = scalar_lea.vmem [#allocation2], 8
    %v202 = vld [vmem:[%s201] sm:$0xff]
    %v203 = vpack.c.bf16 %v195, %v195
    %205 = vrot.lane.b32.xlu0 %v203, 32
    %v206 = vpop.permute.xlu0 %205
    %v208 = vsel %vm141, %v206, 0
    %210 = vmatpush.bf16.msra.mxu0 0
    %211 = vmatpush.bf16.msra.mxu0 0
    %212 = vmatpush.bf16.msra.mxu0 0
    %213 = vmatpush.bf16.msra.mxu0 0
    %214 = vmatpush.bf16.msra.mxu0 0
    %215 = vmatpush.bf16.msra.mxu0 0
    %216 = vmatpush.bf16.msra.mxu0 %v138
    %217 = vmatpush.bf16.msra.mxu0 %v137
    %218 = vmatmul.bf16.gmra.mxu0 %v208
    %v219 = vpop.f32.mrf.mxu0
    %v220 = vadd.f32 0.0, %v219
    %v221 = vpop.f32.mrf.mxu0
    %222 = vdwg.mxu0
    %v223 = vadd.f32 %v202, %v220
    %v224 = vxor.u32 %v223, 2147483648
    %v225 = vmul.f32 %v224, 1.442695
    %v226 = vpow.pop %v225
    %v227 = vadd.f32 %v226, 1.0
    %v228 = vrcp.pop %v227
    %v229 = vmul.f32 %v227, %v228
    %v230 = vsub.f32 1.0, %v229
    %v231 = vmul.f32 %v228, %v230
    %v232 = vadd.f32 %v228, %v231
    %vm233 = vweird.f32 %v227
    %vm234 = vweird.f32 %v228
    %vm235 = vmor %vm233, %vm234
    %v236 = vsel %vm235, %v228, %v232
    %v237 = vand.u32 2147483647, %v227
    %vm238 = vcmp.eq.f32.partialorder %v237, 8.507059e+37
    %v239 = vand.u32 %v227, 2147483648
    %v240 = vor.u32 1.1754944e-38, %v239
    %v241 = vsel %vm238, %v240, %v236
    %v242 = vmul.f32 1.0, %v241
    %v243 = vtanh.pop %v223
    %v244 = vmul.f32 %v242, %v189
    %246 = vrot.lane.b32.xlu0 %v243, 64
    %v247 = vpop.permute.xlu0 %246
    %v249 = vmul.f32 %v242, %v247
    %251 = vrot.lane.b32.xlu0 %v249, 32
    %v252 = vpop.permute.xlu0 %251
    %v254 = vadd.f32 %v244, %v252
    %v255 = vtanh.pop %v254
    %257 = vrot.lane.b32.xlu0 %v255, 64
    %v258 = vpop.permute.xlu0 %257
    %v260 = vmul.f32 %v242, %v258
    %262 = vrot.lane.b32.xlu0 %v260, 32
    %v263 = vpop.permute.xlu0 %262
    %s265 = scalar_lea.vmem [#allocation3], 8
    %266 = vst.msk [vmem:[%s265] sm:$0xff] %vm141, %v263
    %s267 = scalar_lea.vmem [#allocation2], 16
    %v268 = vld [vmem:[%s267] sm:$0xff]
    %v269 = vpack.c.bf16 %v260, %v260
    %271 = vrot.lane.b32.xlu0 %v269, 32
    %v272 = vpop.permute.xlu0 %271
    %v274 = vsel %vm141, %v272, 0
    %276 = vmatpush.bf16.msra.mxu0 0
    %277 = vmatpush.bf16.msra.mxu0 0
    %278 = vmatpush.bf16.msra.mxu0 0
    %279 = vmatpush.bf16.msra.mxu0 0
    %280 = vmatpush.bf16.msra.mxu0 0
    %281 = vmatpush.bf16.msra.mxu0 0
    %282 = vmatpush.bf16.msra.mxu0 %v138
    %283 = vmatpush.bf16.msra.mxu0 %v137
    %284 = vmatmul.bf16.gmra.mxu0 %v274
    %v285 = vpop.f32.mrf.mxu0
    %v286 = vadd.f32 0.0, %v285
    %v287 = vpop.f32.mrf.mxu0
    %288 = vdwg.mxu0
    %v289 = vadd.f32 %v268, %v286
    %v290 = vxor.u32 %v289, 2147483648
    %v291 = vmul.f32 %v290, 1.442695
    %v292 = vpow.pop %v291
    %v293 = vadd.f32 %v292, 1.0
    %v294 = vrcp.pop %v293
    %v295 = vmul.f32 %v293, %v294
    %v296 = vsub.f32 1.0, %v295
    %v297 = vmul.f32 %v294, %v296
    %v298 = vadd.f32 %v294, %v297
    %vm299 = vweird.f32 %v293
    %vm300 = vweird.f32 %v294
    %vm301 = vmor %vm299, %vm300
    %v302 = vsel %vm301, %v294, %v298
    %v303 = vand.u32 2147483647, %v293
    %vm304 = vcmp.eq.f32.partialorder %v303, 8.507059e+37
    %v305 = vand.u32 %v293, 2147483648
    %v306 = vor.u32 1.1754944e-38, %v305
    %v307 = vsel %vm304, %v306, %v302
    %v308 = vmul.f32 1.0, %v307
    %v309 = vtanh.pop %v289
    %v310 = vmul.f32 %v308, %v254
    %312 = vrot.lane.b32.xlu0 %v309, 64
    %v313 = vpop.permute.xlu0 %312
    %v315 = vmul.f32 %v308, %v313
    %317 = vrot.lane.b32.xlu0 %v315, 32
    %v318 = vpop.permute.xlu0 %317
    %v320 = vadd.f32 %v310, %v318
    %v321 = vtanh.pop %v320
    %323 = vrot.lane.b32.xlu0 %v321, 64
    %v324 = vpop.permute.xlu0 %323
    %v326 = vmul.f32 %v308, %v324
    %328 = vrot.lane.b32.xlu0 %v326, 32
    %v329 = vpop.permute.xlu0 %328
    %s331 = scalar_lea.vmem [#allocation3], 16
    %332 = vst.msk [vmem:[%s331] sm:$0xff] %vm141, %v329
    %s333 = scalar_lea.vmem [#allocation2], 24
    %v334 = vld [vmem:[%s333] sm:$0xff]
    %v335 = vpack.c.bf16 %v326, %v326
    %337 = vrot.lane.b32.xlu0 %v335, 32
    %v338 = vpop.permute.xlu0 %337
    %v340 = vsel %vm141, %v338, 0
    %342 = vmatpush.bf16.msra.mxu0 0
    %343 = vmatpush.bf16.msra.mxu0 0
    %344 = vmatpush.bf16.msra.mxu0 0
    %345 = vmatpush.bf16.msra.mxu0 0
    %346 = vmatpush.bf16.msra.mxu0 0
    %347 = vmatpush.bf16.msra.mxu0 0
    %348 = vmatpush.bf16.msra.mxu0 %v138
    %349 = vmatpush.bf16.msra.mxu0 %v137
    %350 = vmatmul.bf16.gmra.mxu0 %v340
    %v351 = vpop.f32.mrf.mxu0
    %v352 = vadd.f32 0.0, %v351
    %v353 = vpop.f32.mrf.mxu0
    %354 = vdwg.mxu0
    %v355 = vadd.f32 %v334, %v352
    %v356 = vxor.u32 %v355, 2147483648
    %v357 = vmul.f32 %v356, 1.442695
    %v358 = vpow.pop %v357
    %v359 = vadd.f32 %v358, 1.0
    %v360 = vrcp.pop %v359
    %v361 = vmul.f32 %v359, %v360
    %v362 = vsub.f32 1.0, %v361
    %v363 = vmul.f32 %v360, %v362
    %v364 = vadd.f32 %v360, %v363
    %vm365 = vweird.f32 %v359
    %vm366 = vweird.f32 %v360
    %vm367 = vmor %vm365, %vm366
    %v368 = vsel %vm367, %v360, %v364
    %v369 = vand.u32 2147483647, %v359
    %vm370 = vcmp.eq.f32.partialorder %v369, 8.507059e+37
    %v371 = vand.u32 %v359, 2147483648
    %v372 = vor.u32 1.1754944e-38, %v371
    %v373 = vsel %vm370, %v372, %v368
    %v374 = vmul.f32 1.0, %v373
    %v375 = vtanh.pop %v355
    %v376 = vmul.f32 %v374, %v320
    %378 = vrot.lane.b32.xlu0 %v375, 64
    %v379 = vpop.permute.xlu0 %378
    %v381 = vmul.f32 %v374, %v379
    %383 = vrot.lane.b32.xlu0 %v381, 32
    %v384 = vpop.permute.xlu0 %383
    %v386 = vadd.f32 %v376, %v384
    %v387 = vtanh.pop %v386
    %389 = vrot.lane.b32.xlu0 %v387, 64
    %v390 = vpop.permute.xlu0 %389
    %v392 = vmul.f32 %v374, %v390
    %394 = vrot.lane.b32.xlu0 %v392, 32
    %v395 = vpop.permute.xlu0 %394
    %s397 = scalar_lea.vmem [#allocation3], 24
    %398 = vst.msk [vmem:[%s397] sm:$0xff] %vm141, %v395
    %s399 = scalar_lea.vmem [#allocation2], 32
    %v400 = vld [vmem:[%s399] sm:$0xff]
    %v401 = vpack.c.bf16 %v392, %v392
    %403 = vrot.lane.b32.xlu0 %v401, 32
    %v404 = vpop.permute.xlu0 %403
    %v406 = vsel %vm141, %v404, 0
    %408 = vmatpush.bf16.msra.mxu0 0
    %409 = vmatpush.bf16.msra.mxu0 0
    %410 = vmatpush.bf16.msra.mxu0 0
    %411 = vmatpush.bf16.msra.mxu0 0
    %412 = vmatpush.bf16.msra.mxu0 0
    %413 = vmatpush.bf16.msra.mxu0 0
    %414 = vmatpush.bf16.msra.mxu0 %v138
    %415 = vmatpush.bf16.msra.mxu0 %v137
    %416 = vmatmul.bf16.gmra.mxu0 %v406
    %v417 = vpop.f32.mrf.mxu0
    %v418 = vadd.f32 0.0, %v417
    %v419 = vpop.f32.mrf.mxu0
    %420 = vdwg.mxu0
    %v421 = vadd.f32 %v400, %v418
    %v422 = vxor.u32 %v421, 2147483648
    %v423 = vmul.f32 %v422, 1.442695
    %v424 = vpow.pop %v423
    %v425 = vadd.f32 %v424, 1.0
    %v426 = vrcp.pop %v425
    %v427 = vmul.f32 %v425, %v426
    %v428 = vsub.f32 1.0, %v427
    %v429 = vmul.f32 %v426, %v428
    %v430 = vadd.f32 %v426, %v429
    %vm431 = vweird.f32 %v425
    %vm432 = vweird.f32 %v426
    %vm433 = vmor %vm431, %vm432
    %v434 = vsel %vm433, %v426, %v430
    %v435 = vand.u32 2147483647, %v425
    %vm436 = vcmp.eq.f32.partialorder %v435, 8.507059e+37
    %v437 = vand.u32 %v425, 2147483648
    %v438 = vor.u32 1.1754944e-38, %v437
    %v439 = vsel %vm436, %v438, %v434
    %v440 = vmul.f32 1.0, %v439
    %v441 = vtanh.pop %v421
    %v442 = vmul.f32 %v440, %v386
    %444 = vrot.lane.b32.xlu0 %v441, 64
    %v445 = vpop.permute.xlu0 %444
    %v447 = vmul.f32 %v440, %v445
    %449 = vrot.lane.b32.xlu0 %v447, 32
    %v450 = vpop.permute.xlu0 %449
    %v452 = vadd.f32 %v442, %v450
    %v453 = vtanh.pop %v452
    %455 = vrot.lane.b32.xlu0 %v453, 64
    %v456 = vpop.permute.xlu0 %455
    %v458 = vmul.f32 %v440, %v456
    %460 = vrot.lane.b32.xlu0 %v458, 32
    %v461 = vpop.permute.xlu0 %460
    %s463 = scalar_lea.vmem [#allocation3], 32
    %464 = vst.msk [vmem:[%s463] sm:$0xff] %vm141, %v461
    %s465 = scalar_lea.vmem [#allocation2], 40
    %v466 = vld [vmem:[%s465] sm:$0xff]
    %v467 = vpack.c.bf16 %v458, %v458
    %469 = vrot.lane.b32.xlu0 %v467, 32
    %v470 = vpop.permute.xlu0 %469
    %v472 = vsel %vm141, %v470, 0
    %474 = vmatpush.bf16.msra.mxu0 0
    %475 = vmatpush.bf16.msra.mxu0 0
    %476 = vmatpush.bf16.msra.mxu0 0
    %477 = vmatpush.bf16.msra.mxu0 0
    %478 = vmatpush.bf16.msra.mxu0 0
    %479 = vmatpush.bf16.msra.mxu0 0
    %480 = vmatpush.bf16.msra.mxu0 %v138
    %481 = vmatpush.bf16.msra.mxu0 %v137
    %482 = vmatmul.bf16.gmra.mxu0 %v472
    %v483 = vpop.f32.mrf.mxu0
    %v484 = vadd.f32 0.0, %v483
    %v485 = vpop.f32.mrf.mxu0
    %486 = vdwg.mxu0
    %v487 = vadd.f32 %v466, %v484
    %v488 = vxor.u32 %v487, 2147483648
    %v489 = vmul.f32 %v488, 1.442695
    %v490 = vpow.pop %v489
    %v491 = vadd.f32 %v490, 1.0
    %v492 = vrcp.pop %v491
    %v493 = vmul.f32 %v491, %v492
    %v494 = vsub.f32 1.0, %v493
    %v495 = vmul.f32 %v492, %v494
    %v496 = vadd.f32 %v492, %v495
    %vm497 = vweird.f32 %v491
    %vm498 = vweird.f32 %v492
    %vm499 = vmor %vm497, %vm498
    %v500 = vsel %vm499, %v492, %v496
    %v501 = vand.u32 2147483647, %v491
    %vm502 = vcmp.eq.f32.partialorder %v501, 8.507059e+37
    %v503 = vand.u32 %v491, 2147483648
    %v504 = vor.u32 1.1754944e-38, %v503
    %v505 = vsel %vm502, %v504, %v500
    %v506 = vmul.f32 1.0, %v505
    %v507 = vtanh.pop %v487
    %v508 = vmul.f32 %v506, %v452
    %510 = vrot.lane.b32.xlu0 %v507, 64
    %v511 = vpop.permute.xlu0 %510
    %v513 = vmul.f32 %v506, %v511
    %515 = vrot.lane.b32.xlu0 %v513, 32
    %v516 = vpop.permute.xlu0 %515
    %v518 = vadd.f32 %v508, %v516
    %v519 = vtanh.pop %v518
    %521 = vrot.lane.b32.xlu0 %v519, 64
    %v522 = vpop.permute.xlu0 %521
    %v524 = vmul.f32 %v506, %v522
    %526 = vrot.lane.b32.xlu0 %v524, 32
    %v527 = vpop.permute.xlu0 %526
    %s529 = scalar_lea.vmem [#allocation3], 40
    %530 = vst.msk [vmem:[%s529] sm:$0xff] %vm141, %v527
    %s531 = scalar_lea.vmem [#allocation2], 48
    %v532 = vld [vmem:[%s531] sm:$0xff]
    %v533 = vpack.c.bf16 %v524, %v524
    %535 = vrot.lane.b32.xlu0 %v533, 32
    %v536 = vpop.permute.xlu0 %535
    %v538 = vsel %vm141, %v536, 0
    %540 = vmatpush.bf16.msra.mxu0 0
    %541 = vmatpush.bf16.msra.mxu0 0
    %542 = vmatpush.bf16.msra.mxu0 0
    %543 = vmatpush.bf16.msra.mxu0 0
    %544 = vmatpush.bf16.msra.mxu0 0
    %545 = vmatpush.bf16.msra.mxu0 0
    %546 = vmatpush.bf16.msra.mxu0 %v138
    %547 = vmatpush.bf16.msra.mxu0 %v137
    %548 = vmatmul.bf16.gmra.mxu0 %v538
    %v549 = vpop.f32.mrf.mxu0
    %v550 = vadd.f32 0.0, %v549
    %v551 = vpop.f32.mrf.mxu0
    %552 = vdwg.mxu0
    %v553 = vadd.f32 %v532, %v550
    %v554 = vxor.u32 %v553, 2147483648
    %v555 = vmul.f32 %v554, 1.442695
    %v556 = vpow.pop %v555
    %v557 = vadd.f32 %v556, 1.0
    %v558 = vrcp.pop %v557
    %v559 = vmul.f32 %v557, %v558
    %v560 = vsub.f32 1.0, %v559
    %v561 = vmul.f32 %v558, %v560
    %v562 = vadd.f32 %v558, %v561
    %vm563 = vweird.f32 %v557
    %vm564 = vweird.f32 %v558
    %vm565 = vmor %vm563, %vm564
    %v566 = vsel %vm565, %v558, %v562
    %v567 = vand.u32 2147483647, %v557
    %vm568 = vcmp.eq.f32.partialorder %v567, 8.507059e+37
    %v569 = vand.u32 %v557, 2147483648
    %v570 = vor.u32 1.1754944e-38, %v569
    %v571 = vsel %vm568, %v570, %v566
    %v572 = vmul.f32 1.0, %v571
    %v573 = vtanh.pop %v553
    %v574 = vmul.f32 %v572, %v518
    %576 = vrot.lane.b32.xlu0 %v573, 64
    %v577 = vpop.permute.xlu0 %576
    %v579 = vmul.f32 %v572, %v577
    %581 = vrot.lane.b32.xlu0 %v579, 32
    %v582 = vpop.permute.xlu0 %581
    %v584 = vadd.f32 %v574, %v582
    %v585 = vtanh.pop %v584
    %587 = vrot.lane.b32.xlu0 %v585, 64
    %v588 = vpop.permute.xlu0 %587
    %v590 = vmul.f32 %v572, %v588
    %592 = vrot.lane.b32.xlu0 %v590, 32
    %v593 = vpop.permute.xlu0 %592
    %s595 = scalar_lea.vmem [#allocation3], 48
    %596 = vst.msk [vmem:[%s595] sm:$0xff] %vm141, %v593
    %s597 = scalar_lea.vmem [#allocation2], 56
    %v598 = vld [vmem:[%s597] sm:$0xff]
    %v599 = vpack.c.bf16 %v590, %v590
    %601 = vrot.lane.b32.xlu0 %v599, 32
    %v602 = vpop.permute.xlu0 %601
    %v604 = vsel %vm141, %v602, 0
    %606 = vmatpush.bf16.msra.mxu0 0
    %607 = vmatpush.bf16.msra.mxu0 0
    %608 = vmatpush.bf16.msra.mxu0 0
    %609 = vmatpush.bf16.msra.mxu0 0
    %610 = vmatpush.bf16.msra.mxu0 0
    %611 = vmatpush.bf16.msra.mxu0 0
    %612 = vmatpush.bf16.msra.mxu0 %v138
    %613 = vmatpush.bf16.msra.mxu0 %v137
    %614 = vmatmul.bf16.gmra.mxu0 %v604
    %v615 = vpop.f32.mrf.mxu0
    %v616 = vadd.f32 0.0, %v615
    %v617 = vpop.f32.mrf.mxu0
    %618 = vdwg.mxu0
    %v619 = vadd.f32 %v598, %v616
    %v620 = vxor.u32 %v619, 2147483648
    %v621 = vmul.f32 %v620, 1.442695
    %v622 = vpow.pop %v621
    %v623 = vadd.f32 %v622, 1.0
    %v624 = vrcp.pop %v623
    %v625 = vmul.f32 %v623, %v624
    %v626 = vsub.f32 1.0, %v625
    %v627 = vmul.f32 %v624, %v626
    %v628 = vadd.f32 %v624, %v627
    %vm629 = vweird.f32 %v623
    %vm630 = vweird.f32 %v624
    %vm631 = vmor %vm629, %vm630
    %v632 = vsel %vm631, %v624, %v628
    %v633 = vand.u32 2147483647, %v623
    %vm634 = vcmp.eq.f32.partialorder %v633, 8.507059e+37
    %v635 = vand.u32 %v623, 2147483648
    %v636 = vor.u32 1.1754944e-38, %v635
    %v637 = vsel %vm634, %v636, %v632
    %v638 = vmul.f32 1.0, %v637
    %v639 = vtanh.pop %v619
    %v640 = vmul.f32 %v638, %v584
    %642 = vrot.lane.b32.xlu0 %v639, 64
    %v643 = vpop.permute.xlu0 %642
    %v645 = vmul.f32 %v638, %v643
    %647 = vrot.lane.b32.xlu0 %v645, 32
    %v648 = vpop.permute.xlu0 %647
    %v650 = vadd.f32 %v640, %v648
    %v651 = vtanh.pop %v650
    %653 = vrot.lane.b32.xlu0 %v651, 64
    %v654 = vpop.permute.xlu0 %653
    %v656 = vmul.f32 %v638, %v654
    %658 = vrot.lane.b32.xlu0 %v656, 32
    %v659 = vpop.permute.xlu0 %658
    %s661 = scalar_lea.vmem [#allocation3], 56
    %662 = vst.msk [vmem:[%s661] sm:$0xff] %vm141, %v659
    %v663 = vld [vmem:[#allocation3] sm:$0xff]
    %v664 = vld [vmem:[#allocation3 + $0x8] sm:$0xff]
    %v665 = vld [vmem:[#allocation3 + $0x10] sm:$0xff]
    %v666 = vld [vmem:[#allocation3 + $0x18] sm:$0xff]
    %v667 = vld [vmem:[#allocation3 + $0x20] sm:$0xff]
    %v668 = vld [vmem:[#allocation3 + $0x28] sm:$0xff]
    %v669 = vld [vmem:[#allocation3 + $0x30] sm:$0xff]
    %v670 = vld [vmem:[#allocation3 + $0x38] sm:$0xff]
    %v671 = vld [vmem:[%s4] sm:$0xf]
    %v672 = vld [vmem:[%s4 + $0x4] sm:$0xf]
    %v673 = vld [vmem:[%s4 + $0x8] sm:$0xf]
    %v674 = vld [vmem:[%s4 + $0xc] sm:$0xf]
    %v675 = vpack.c.bf16 %v664, %v663
    %v676 = vpack.c.bf16 %v666, %v665
    %v677 = vpack.c.bf16 %v668, %v667
    %v678 = vpack.c.bf16 %v670, %v669
    %v679 = vld [vmem:[%s6] sm:$0x1]
    %v681 = vperm.slane %v679, 0
    %v687 = vunpack.c.l.b16 %v671
    %v688 = vunpack.c.l.b16 %v672
    %v689 = vunpack.c.l.b16 %v673
    %v690 = vunpack.c.l.b16 %v674
    %v691 = vpack.c.b16 %v688, %v687
    %v692 = vpack.c.b16 %v690, %v689
    %v696 = vsel %vm141, %v675, 0
    %v699 = vsel %vm141, %v676, 0
    %v702 = vsel %vm141, %v677, 0
    %v705 = vsel %vm141, %v678, 0
    %707 = vmatpush.bf16.msra.mxu0 0
    %708 = vmatpush.bf16.msra.mxu0 0
    %709 = vmatpush.bf16.msra.mxu0 0
    %710 = vmatpush.bf16.msra.mxu0 0
    %711 = vmatpush.bf16.msra.mxu0 0
    %712 = vmatpush.bf16.msra.mxu0 0
    %713 = vmatpush.bf16.msra.mxu0 %v692
    %714 = vmatpush.bf16.msra.mxu0 %v691
    %715 = vmatmul.bf16.gmra.mxu0 %v696
    %v716 = vpop.f32.mrf.mxu0
    %v717 = vadd.f32 %v681, %v716
    %v718 = vpop.f32.mrf.mxu0
    %v719 = vadd.f32 %v681, %v718
    %720 = vmatmul.bf16.gmra.mxu0 %v699
    %v721 = vpop.f32.mrf.mxu0
    %v722 = vadd.f32 %v681, %v721
    %v723 = vpop.f32.mrf.mxu0
    %v724 = vadd.f32 %v681, %v723
    %725 = vmatmul.bf16.gmra.mxu0 %v702
    %v726 = vpop.f32.mrf.mxu0
    %v727 = vadd.f32 %v681, %v726
    %v728 = vpop.f32.mrf.mxu0
    %v729 = vadd.f32 %v681, %v728
    %730 = vmatmul.bf16.gmra.mxu0 %v705
    %v731 = vpop.f32.mrf.mxu0
    %v732 = vadd.f32 %v681, %v731
    %v733 = vpop.f32.mrf.mxu0
    %v734 = vadd.f32 %v681, %v733
    %735 = vdwg.mxu0
    %736 = vst [vmem:[#allocation2] sm:$0xff] %v717
    %737 = vst [vmem:[#allocation2 + $0x8] sm:$0xff] %v719
    %738 = vst [vmem:[#allocation2 + $0x10] sm:$0xff] %v722
    %739 = vst [vmem:[#allocation2 + $0x18] sm:$0xff] %v724
    %740 = vst [vmem:[#allocation2 + $0x20] sm:$0xff] %v727
    %741 = vst [vmem:[#allocation2 + $0x28] sm:$0xff] %v729
    %742 = vst [vmem:[#allocation2 + $0x30] sm:$0xff] %v732
    %743 = vst [vmem:[#allocation2 + $0x38] sm:$0xff] %v734
    %v744 = vld [vmem:[%s5] sm:$0xf]
    %v745 = vld [vmem:[%s5 + $0x4] sm:$0xf]
    %v746 = vld [vmem:[%s5 + $0x8] sm:$0xf]
    %v747 = vld [vmem:[%s5 + $0xc] sm:$0xf]
    %v748 = vld [vmem:[#allocation2] sm:$0xff]
    %v753 = vunpack.c.l.b16 %v744
    %v754 = vunpack.c.l.b16 %v745
    %v755 = vunpack.c.l.b16 %v746
    %v756 = vunpack.c.l.b16 %v747
    %v757 = vpack.c.b16 %v754, %v753
    %v758 = vpack.c.b16 %v756, %v755
    %761 = vmatpush.bf16.msra.mxu0 0
    %762 = vmatpush.bf16.msra.mxu0 0
    %763 = vmatpush.bf16.msra.mxu0 0
    %764 = vmatpush.bf16.msra.mxu0 0
    %765 = vmatpush.bf16.msra.mxu0 0
    %766 = vmatpush.bf16.msra.mxu0 0
    %767 = vmatpush.bf16.msra.mxu0 %v758
    %768 = vmatpush.bf16.msra.mxu0 %v757
    %769 = vmatmul.bf16.gmra.mxu0 %v143
    %v770 = vpop.f32.mrf.mxu0
    %v771 = vadd.f32 0.0, %v770
    %v772 = vpop.f32.mrf.mxu0
    %773 = vdwg.mxu0
    %v774 = vadd.f32 %v748, %v771
    %v775 = vxor.u32 %v774, 2147483648
    %v776 = vmul.f32 %v775, 1.442695
    %v777 = vpow.pop %v776
    %v778 = vadd.f32 %v777, 1.0
    %v779 = vrcp.pop %v778
    %v780 = vmul.f32 %v778, %v779
    %v781 = vsub.f32 1.0, %v780
    %v782 = vmul.f32 %v779, %v781
    %v783 = vadd.f32 %v779, %v782
    %vm784 = vweird.f32 %v778
    %vm785 = vweird.f32 %v779
    %vm786 = vmor %vm784, %vm785
    %v787 = vsel %vm786, %v779, %v783
    %v788 = vand.u32 2147483647, %v778
    %vm789 = vcmp.eq.f32.partialorder %v788, 8.507059e+37
    %v790 = vand.u32 %v778, 2147483648
    %v791 = vor.u32 1.1754944e-38, %v790
    %v792 = vsel %vm789, %v791, %v787
    %v793 = vmul.f32 1.0, %v792
    %v794 = vtanh.pop %v774
    %v795 = vmul.f32 %v793, 0.0
    %797 = vrot.lane.b32.xlu0 %v794, 64
    %v798 = vpop.permute.xlu0 %797
    %v800 = vmul.f32 %v793, %v798
    %802 = vrot.lane.b32.xlu0 %v800, 32
    %v803 = vpop.permute.xlu0 %802
    %v805 = vadd.f32 %v795, %v803
    %v806 = vtanh.pop %v805
    %808 = vrot.lane.b32.xlu0 %v806, 64
    %v809 = vpop.permute.xlu0 %808
    %v811 = vmul.f32 %v793, %v809
    %813 = vrot.lane.b32.xlu0 %v811, 32
    %v814 = vpop.permute.xlu0 %813
    %816 = vst.msk [vmem:[#allocation3] sm:$0xff] %vm141, %v814
    %v817 = vld [vmem:[%s201] sm:$0xff]
    %v818 = vpack.c.bf16 %v811, %v811
    %820 = vrot.lane.b32.xlu0 %v818, 32
    %v821 = vpop.permute.xlu0 %820
    %v823 = vsel %vm141, %v821, 0
    %825 = vmatpush.bf16.msra.mxu0 0
    %826 = vmatpush.bf16.msra.mxu0 0
    %827 = vmatpush.bf16.msra.mxu0 0
    %828 = vmatpush.bf16.msra.mxu0 0
    %829 = vmatpush.bf16.msra.mxu0 0
    %830 = vmatpush.bf16.msra.mxu0 0
    %831 = vmatpush.bf16.msra.mxu0 %v758
    %832 = vmatpush.bf16.msra.mxu0 %v757
    %833 = vmatmul.bf16.gmra.mxu0 %v823
    %v834 = vpop.f32.mrf.mxu0
    %v835 = vadd.f32 0.0, %v834
    %v836 = vpop.f32.mrf.mxu0
    %837 = vdwg.mxu0
    %v838 = vadd.f32 %v817, %v835
    %v839 = vxor.u32 %v838, 2147483648
    %v840 = vmul.f32 %v839, 1.442695
    %v841 = vpow.pop %v840
    %v842 = vadd.f32 %v841, 1.0
    %v843 = vrcp.pop %v842
    %v844 = vmul.f32 %v842, %v843
    %v845 = vsub.f32 1.0, %v844
    %v846 = vmul.f32 %v843, %v845
    %v847 = vadd.f32 %v843, %v846
    %vm848 = vweird.f32 %v842
    %vm849 = vweird.f32 %v843
    %vm850 = vmor %vm848, %vm849
    %v851 = vsel %vm850, %v843, %v847
    %v852 = vand.u32 2147483647, %v842
    %vm853 = vcmp.eq.f32.partialorder %v852, 8.507059e+37
    %v854 = vand.u32 %v842, 2147483648
    %v855 = vor.u32 1.1754944e-38, %v854
    %v856 = vsel %vm853, %v855, %v851
    %v857 = vmul.f32 1.0, %v856
    %v858 = vtanh.pop %v838
    %v859 = vmul.f32 %v857, %v805
    %861 = vrot.lane.b32.xlu0 %v858, 64
    %v862 = vpop.permute.xlu0 %861
    %v864 = vmul.f32 %v857, %v862
    %866 = vrot.lane.b32.xlu0 %v864, 32
    %v867 = vpop.permute.xlu0 %866
    %v869 = vadd.f32 %v859, %v867
    %v870 = vtanh.pop %v869
    %872 = vrot.lane.b32.xlu0 %v870, 64
    %v873 = vpop.permute.xlu0 %872
    %v875 = vmul.f32 %v857, %v873
    %877 = vrot.lane.b32.xlu0 %v875, 32
    %v878 = vpop.permute.xlu0 %877
    %880 = vst.msk [vmem:[%s265] sm:$0xff] %vm141, %v878
    %v881 = vld [vmem:[%s267] sm:$0xff]
    %v882 = vpack.c.bf16 %v875, %v875
    %884 = vrot.lane.b32.xlu0 %v882, 32
    %v885 = vpop.permute.xlu0 %884
    %v887 = vsel %vm141, %v885, 0
    %889 = vmatpush.bf16.msra.mxu0 0
    %890 = vmatpush.bf16.msra.mxu0 0
    %891 = vmatpush.bf16.msra.mxu0 0
    %892 = vmatpush.bf16.msra.mxu0 0
    %893 = vmatpush.bf16.msra.mxu0 0
    %894 = vmatpush.bf16.msra.mxu0 0
    %895 = vmatpush.bf16.msra.mxu0 %v758
    %896 = vmatpush.bf16.msra.mxu0 %v757
    %897 = vmatmul.bf16.gmra.mxu0 %v887
    %v898 = vpop.f32.mrf.mxu0
    %v899 = vadd.f32 0.0, %v898
    %v900 = vpop.f32.mrf.mxu0
    %901 = vdwg.mxu0
    %v902 = vadd.f32 %v881, %v899
    %v903 = vxor.u32 %v902, 2147483648
    %v904 = vmul.f32 %v903, 1.442695
    %v905 = vpow.pop %v904
    %v906 = vadd.f32 %v905, 1.0
    %v907 = vrcp.pop %v906
    %v908 = vmul.f32 %v906, %v907
    %v909 = vsub.f32 1.0, %v908
    %v910 = vmul.f32 %v907, %v909
    %v911 = vadd.f32 %v907, %v910
    %vm912 = vweird.f32 %v906
    %vm913 = vweird.f32 %v907
    %vm914 = vmor %vm912, %vm913
    %v915 = vsel %vm914, %v907, %v911
    %v916 = vand.u32 2147483647, %v906
    %vm917 = vcmp.eq.f32.partialorder %v916, 8.507059e+37
    %v918 = vand.u32 %v906, 2147483648
    %v919 = vor.u32 1.1754944e-38, %v918
    %v920 = vsel %vm917, %v919, %v915
    %v921 = vmul.f32 1.0, %v920
    %v922 = vtanh.pop %v902
    %v923 = vmul.f32 %v921, %v869
    %925 = vrot.lane.b32.xlu0 %v922, 64
    %v926 = vpop.permute.xlu0 %925
    %v928 = vmul.f32 %v921, %v926
    %930 = vrot.lane.b32.xlu0 %v928, 32
    %v931 = vpop.permute.xlu0 %930
    %v933 = vadd.f32 %v923, %v931
    %v934 = vtanh.pop %v933
    %936 = vrot.lane.b32.xlu0 %v934, 64
    %v937 = vpop.permute.xlu0 %936
    %v939 = vmul.f32 %v921, %v937
    %941 = vrot.lane.b32.xlu0 %v939, 32
    %v942 = vpop.permute.xlu0 %941
    %944 = vst.msk [vmem:[%s331] sm:$0xff] %vm141, %v942
    %v945 = vld [vmem:[%s333] sm:$0xff]
    %v946 = vpack.c.bf16 %v939, %v939
    %948 = vrot.lane.b32.xlu0 %v946, 32
    %v949 = vpop.permute.xlu0 %948
    %v951 = vsel %vm141, %v949, 0
    %953 = vmatpush.bf16.msra.mxu0 0
    %954 = vmatpush.bf16.msra.mxu0 0
    %955 = vmatpush.bf16.msra.mxu0 0
    %956 = vmatpush.bf16.msra.mxu0 0
    %957 = vmatpush.bf16.msra.mxu0 0
    %958 = vmatpush.bf16.msra.mxu0 0
    %959 = vmatpush.bf16.msra.mxu0 %v758
    %960 = vmatpush.bf16.msra.mxu0 %v757
    %961 = vmatmul.bf16.gmra.mxu0 %v951
    %v962 = vpop.f32.mrf.mxu0
    %v963 = vadd.f32 0.0, %v962
    %v964 = vpop.f32.mrf.mxu0
    %965 = vdwg.mxu0
    %v966 = vadd.f32 %v945, %v963
    %v967 = vxor.u32 %v966, 2147483648
    %v968 = vmul.f32 %v967, 1.442695
    %v969 = vpow.pop %v968
    %v970 = vadd.f32 %v969, 1.0
    %v971 = vrcp.pop %v970
    %v972 = vmul.f32 %v970, %v971
    %v973 = vsub.f32 1.0, %v972
    %v974 = vmul.f32 %v971, %v973
    %v975 = vadd.f32 %v971, %v974
    %vm976 = vweird.f32 %v970
    %vm977 = vweird.f32 %v971
    %vm978 = vmor %vm976, %vm977
    %v979 = vsel %vm978, %v971, %v975
    %v980 = vand.u32 2147483647, %v970
    %vm981 = vcmp.eq.f32.partialorder %v980, 8.507059e+37
    %v982 = vand.u32 %v970, 2147483648
    %v983 = vor.u32 1.1754944e-38, %v982
    %v984 = vsel %vm981, %v983, %v979
    %v985 = vmul.f32 1.0, %v984
    %v986 = vtanh.pop %v966
    %v987 = vmul.f32 %v985, %v933
    %989 = vrot.lane.b32.xlu0 %v986, 64
    %v990 = vpop.permute.xlu0 %989
    %v992 = vmul.f32 %v985, %v990
    %994 = vrot.lane.b32.xlu0 %v992, 32
    %v995 = vpop.permute.xlu0 %994
    %v997 = vadd.f32 %v987, %v995
    %v998 = vtanh.pop %v997
    %1000 = vrot.lane.b32.xlu0 %v998, 64
    %v1001 = vpop.permute.xlu0 %1000
    %v1003 = vmul.f32 %v985, %v1001
    %1005 = vrot.lane.b32.xlu0 %v1003, 32
    %v1006 = vpop.permute.xlu0 %1005
    %1008 = vst.msk [vmem:[%s397] sm:$0xff] %vm141, %v1006
    %v1009 = vld [vmem:[%s399] sm:$0xff]
    %v1010 = vpack.c.bf16 %v1003, %v1003
    %1012 = vrot.lane.b32.xlu0 %v1010, 32
    %v1013 = vpop.permute.xlu0 %1012
    %v1015 = vsel %vm141, %v1013, 0
    %1017 = vmatpush.bf16.msra.mxu0 0
    %1018 = vmatpush.bf16.msra.mxu0 0
    %1019 = vmatpush.bf16.msra.mxu0 0
    %1020 = vmatpush.bf16.msra.mxu0 0
    %1021 = vmatpush.bf16.msra.mxu0 0
    %1022 = vmatpush.bf16.msra.mxu0 0
    %1023 = vmatpush.bf16.msra.mxu0 %v758
    %1024 = vmatpush.bf16.msra.mxu0 %v757
    %1025 = vmatmul.bf16.gmra.mxu0 %v1015
    %v1026 = vpop.f32.mrf.mxu0
    %v1027 = vadd.f32 0.0, %v1026
    %v1028 = vpop.f32.mrf.mxu0
    %1029 = vdwg.mxu0
    %v1030 = vadd.f32 %v1009, %v1027
    %v1031 = vxor.u32 %v1030, 2147483648
    %v1032 = vmul.f32 %v1031, 1.442695
    %v1033 = vpow.pop %v1032
    %v1034 = vadd.f32 %v1033, 1.0
    %v1035 = vrcp.pop %v1034
    %v1036 = vmul.f32 %v1034, %v1035
    %v1037 = vsub.f32 1.0, %v1036
    %v1038 = vmul.f32 %v1035, %v1037
    %v1039 = vadd.f32 %v1035, %v1038
    %vm1040 = vweird.f32 %v1034
    %vm1041 = vweird.f32 %v1035
    %vm1042 = vmor %vm1040, %vm1041
    %v1043 = vsel %vm1042, %v1035, %v1039
    %v1044 = vand.u32 2147483647, %v1034
    %vm1045 = vcmp.eq.f32.partialorder %v1044, 8.507059e+37
    %v1046 = vand.u32 %v1034, 2147483648
    %v1047 = vor.u32 1.1754944e-38, %v1046
    %v1048 = vsel %vm1045, %v1047, %v1043
    %v1049 = vmul.f32 1.0, %v1048
    %v1050 = vtanh.pop %v1030
    %v1051 = vmul.f32 %v1049, %v997
    %1053 = vrot.lane.b32.xlu0 %v1050, 64
    %v1054 = vpop.permute.xlu0 %1053
    %v1056 = vmul.f32 %v1049, %v1054
    %1058 = vrot.lane.b32.xlu0 %v1056, 32
    %v1059 = vpop.permute.xlu0 %1058
    %v1061 = vadd.f32 %v1051, %v1059
    %v1062 = vtanh.pop %v1061
    %1064 = vrot.lane.b32.xlu0 %v1062, 64
    %v1065 = vpop.permute.xlu0 %1064
    %v1067 = vmul.f32 %v1049, %v1065
    %1069 = vrot.lane.b32.xlu0 %v1067, 32
    %v1070 = vpop.permute.xlu0 %1069
    %1072 = vst.msk [vmem:[%s463] sm:$0xff] %vm141, %v1070
    %v1073 = vld [vmem:[%s465] sm:$0xff]
    %v1074 = vpack.c.bf16 %v1067, %v1067
    %1076 = vrot.lane.b32.xlu0 %v1074, 32
    %v1077 = vpop.permute.xlu0 %1076
    %v1079 = vsel %vm141, %v1077, 0
    %1081 = vmatpush.bf16.msra.mxu0 0
    %1082 = vmatpush.bf16.msra.mxu0 0
    %1083 = vmatpush.bf16.msra.mxu0 0
    %1084 = vmatpush.bf16.msra.mxu0 0
    %1085 = vmatpush.bf16.msra.mxu0 0
    %1086 = vmatpush.bf16.msra.mxu0 0
    %1087 = vmatpush.bf16.msra.mxu0 %v758
    %1088 = vmatpush.bf16.msra.mxu0 %v757
    %1089 = vmatmul.bf16.gmra.mxu0 %v1079
    %v1090 = vpop.f32.mrf.mxu0
    %v1091 = vadd.f32 0.0, %v1090
    %v1092 = vpop.f32.mrf.mxu0
    %1093 = vdwg.mxu0
    %v1094 = vadd.f32 %v1073, %v1091
    %v1095 = vxor.u32 %v1094, 2147483648
    %v1096 = vmul.f32 %v1095, 1.442695
    %v1097 = vpow.pop %v1096
    %v1098 = vadd.f32 %v1097, 1.0
    %v1099 = vrcp.pop %v1098
    %v1100 = vmul.f32 %v1098, %v1099
    %v1101 = vsub.f32 1.0, %v1100
    %v1102 = vmul.f32 %v1099, %v1101
    %v1103 = vadd.f32 %v1099, %v1102
    %vm1104 = vweird.f32 %v1098
    %vm1105 = vweird.f32 %v1099
    %vm1106 = vmor %vm1104, %vm1105
    %v1107 = vsel %vm1106, %v1099, %v1103
    %v1108 = vand.u32 2147483647, %v1098
    %vm1109 = vcmp.eq.f32.partialorder %v1108, 8.507059e+37
    %v1110 = vand.u32 %v1098, 2147483648
    %v1111 = vor.u32 1.1754944e-38, %v1110
    %v1112 = vsel %vm1109, %v1111, %v1107
    %v1113 = vmul.f32 1.0, %v1112
    %v1114 = vtanh.pop %v1094
    %v1115 = vmul.f32 %v1113, %v1061
    %1117 = vrot.lane.b32.xlu0 %v1114, 64
    %v1118 = vpop.permute.xlu0 %1117
    %v1120 = vmul.f32 %v1113, %v1118
    %1122 = vrot.lane.b32.xlu0 %v1120, 32
    %v1123 = vpop.permute.xlu0 %1122
    %v1125 = vadd.f32 %v1115, %v1123
    %v1126 = vtanh.pop %v1125
    %1128 = vrot.lane.b32.xlu0 %v1126, 64
    %v1129 = vpop.permute.xlu0 %1128
    %v1131 = vmul.f32 %v1113, %v1129
    %1133 = vrot.lane.b32.xlu0 %v1131, 32
    %v1134 = vpop.permute.xlu0 %1133
    %1136 = vst.msk [vmem:[%s529] sm:$0xff] %vm141, %v1134
    %v1137 = vld [vmem:[%s531] sm:$0xff]
    %v1138 = vpack.c.bf16 %v1131, %v1131
    %1140 = vrot.lane.b32.xlu0 %v1138, 32
    %v1141 = vpop.permute.xlu0 %1140
    %v1143 = vsel %vm141, %v1141, 0
    %1145 = vmatpush.bf16.msra.mxu0 0
    %1146 = vmatpush.bf16.msra.mxu0 0
    %1147 = vmatpush.bf16.msra.mxu0 0
    %1148 = vmatpush.bf16.msra.mxu0 0
    %1149 = vmatpush.bf16.msra.mxu0 0
    %1150 = vmatpush.bf16.msra.mxu0 0
    %1151 = vmatpush.bf16.msra.mxu0 %v758
    %1152 = vmatpush.bf16.msra.mxu0 %v757
    %1153 = vmatmul.bf16.gmra.mxu0 %v1143
    %v1154 = vpop.f32.mrf.mxu0
    %v1155 = vadd.f32 0.0, %v1154
    %v1156 = vpop.f32.mrf.mxu0
    %1157 = vdwg.mxu0
    %v1158 = vadd.f32 %v1137, %v1155
    %v1159 = vxor.u32 %v1158, 2147483648
    %v1160 = vmul.f32 %v1159, 1.442695
    %v1161 = vpow.pop %v1160
    %v1162 = vadd.f32 %v1161, 1.0
    %v1163 = vrcp.pop %v1162
    %v1164 = vmul.f32 %v1162, %v1163
    %v1165 = vsub.f32 1.0, %v1164
    %v1166 = vmul.f32 %v1163, %v1165
    %v1167 = vadd.f32 %v1163, %v1166
    %vm1168 = vweird.f32 %v1162
    %vm1169 = vweird.f32 %v1163
    %vm1170 = vmor %vm1168, %vm1169
    %v1171 = vsel %vm1170, %v1163, %v1167
    %v1172 = vand.u32 2147483647, %v1162
    %vm1173 = vcmp.eq.f32.partialorder %v1172, 8.507059e+37
    %v1174 = vand.u32 %v1162, 2147483648
    %v1175 = vor.u32 1.1754944e-38, %v1174
    %v1176 = vsel %vm1173, %v1175, %v1171
    %v1177 = vmul.f32 1.0, %v1176
    %v1178 = vtanh.pop %v1158
    %v1179 = vmul.f32 %v1177, %v1125
    %1181 = vrot.lane.b32.xlu0 %v1178, 64
    %v1182 = vpop.permute.xlu0 %1181
    %v1184 = vmul.f32 %v1177, %v1182
    %1186 = vrot.lane.b32.xlu0 %v1184, 32
    %v1187 = vpop.permute.xlu0 %1186
    %v1189 = vadd.f32 %v1179, %v1187
    %v1190 = vtanh.pop %v1189
    %1192 = vrot.lane.b32.xlu0 %v1190, 64
    %v1193 = vpop.permute.xlu0 %1192
    %v1195 = vmul.f32 %v1177, %v1193
    %1197 = vrot.lane.b32.xlu0 %v1195, 32
    %v1198 = vpop.permute.xlu0 %1197
    %1200 = vst.msk [vmem:[%s595] sm:$0xff] %vm141, %v1198
    %v1201 = vld [vmem:[%s597] sm:$0xff]
    %v1202 = vpack.c.bf16 %v1195, %v1195
    %1204 = vrot.lane.b32.xlu0 %v1202, 32
    %v1205 = vpop.permute.xlu0 %1204
    %v1207 = vsel %vm141, %v1205, 0
    %1209 = vmatpush.bf16.msra.mxu0 0
    %1210 = vmatpush.bf16.msra.mxu0 0
    %1211 = vmatpush.bf16.msra.mxu0 0
    %1212 = vmatpush.bf16.msra.mxu0 0
    %1213 = vmatpush.bf16.msra.mxu0 0
    %1214 = vmatpush.bf16.msra.mxu0 0
    %1215 = vmatpush.bf16.msra.mxu0 %v758
    %1216 = vmatpush.bf16.msra.mxu0 %v757
    %1217 = vmatmul.bf16.gmra.mxu0 %v1207
    %v1218 = vpop.f32.mrf.mxu0
    %v1219 = vadd.f32 0.0, %v1218
    %v1220 = vpop.f32.mrf.mxu0
    %1221 = vdwg.mxu0
    %v1222 = vadd.f32 %v1201, %v1219
    %v1223 = vxor.u32 %v1222, 2147483648
    %v1224 = vmul.f32 %v1223, 1.442695
    %v1225 = vpow.pop %v1224
    %v1226 = vadd.f32 %v1225, 1.0
    %v1227 = vrcp.pop %v1226
    %v1228 = vmul.f32 %v1226, %v1227
    %v1229 = vsub.f32 1.0, %v1228
    %v1230 = vmul.f32 %v1227, %v1229
    %v1231 = vadd.f32 %v1227, %v1230
    %vm1232 = vweird.f32 %v1226
    %vm1233 = vweird.f32 %v1227
    %vm1234 = vmor %vm1232, %vm1233
    %v1235 = vsel %vm1234, %v1227, %v1231
    %v1236 = vand.u32 2147483647, %v1226
    %vm1237 = vcmp.eq.f32.partialorder %v1236, 8.507059e+37
    %v1238 = vand.u32 %v1226, 2147483648
    %v1239 = vor.u32 1.1754944e-38, %v1238
    %v1240 = vsel %vm1237, %v1239, %v1235
    %v1241 = vmul.f32 1.0, %v1240
    %v1242 = vtanh.pop %v1222
    %v1243 = vmul.f32 %v1241, %v1189
    %1245 = vrot.lane.b32.xlu0 %v1242, 64
    %v1246 = vpop.permute.xlu0 %1245
    %v1248 = vmul.f32 %v1241, %v1246
    %1250 = vrot.lane.b32.xlu0 %v1248, 32
    %v1251 = vpop.permute.xlu0 %1250
    %v1253 = vadd.f32 %v1243, %v1251
    %v1254 = vtanh.pop %v1253
    %1256 = vrot.lane.b32.xlu0 %v1254, 64
    %v1257 = vpop.permute.xlu0 %1256
    %v1259 = vmul.f32 %v1241, %v1257
    %1261 = vrot.lane.b32.xlu0 %v1259, 32
    %v1262 = vpop.permute.xlu0 %1261
    %1264 = vst.msk [vmem:[%s661] sm:$0xff] %vm141, %v1262
    %v1265 = vld [vmem:[#allocation3] sm:$0xff]
    %v1266 = vld [vmem:[#allocation3 + $0x8] sm:$0xff]
    %v1267 = vld [vmem:[#allocation3 + $0x10] sm:$0xff]
    %v1268 = vld [vmem:[#allocation3 + $0x18] sm:$0xff]
    %v1269 = vld [vmem:[#allocation3 + $0x20] sm:$0xff]
    %v1270 = vld [vmem:[#allocation3 + $0x28] sm:$0xff]
    %v1271 = vld [vmem:[#allocation3 + $0x30] sm:$0xff]
    %v1272 = vld [vmem:[#allocation3 + $0x38] sm:$0xff]
    %v1273 = vld [vmem:[%s7] sm:$0xf]
    %v1274 = vld [vmem:[%s7 + $0x4] sm:$0xf]
    %v1275 = vld [vmem:[%s7 + $0x8] sm:$0xf]
    %v1276 = vld [vmem:[%s7 + $0xc] sm:$0xf]
    %v1277 = vpack.c.bf16 %v1266, %v1265
    %v1278 = vpack.c.bf16 %v1268, %v1267
    %v1279 = vpack.c.bf16 %v1270, %v1269
    %v1280 = vpack.c.bf16 %v1272, %v1271
    %v1281 = vld [vmem:[%s8] sm:$0x1]
    %v1283 = vperm.slane %v1281, 0
    %v1289 = vunpack.c.l.b16 %v1273
    %v1290 = vunpack.c.l.b16 %v1274
    %v1291 = vunpack.c.l.b16 %v1275
    %v1292 = vunpack.c.l.b16 %v1276
    %v1293 = vpack.c.b16 %v1290, %v1289
    %v1294 = vpack.c.b16 %v1292, %v1291
    %v1298 = vsel %vm141, %v1277, 0
    %v1301 = vsel %vm141, %v1278, 0
    %v1304 = vsel %vm141, %v1279, 0
    %v1307 = vsel %vm141, %v1280, 0
    %1309 = vmatpush.bf16.msra.mxu0 0
    %1310 = vmatpush.bf16.msra.mxu0 0
    %1311 = vmatpush.bf16.msra.mxu0 0
    %1312 = vmatpush.bf16.msra.mxu0 0
    %1313 = vmatpush.bf16.msra.mxu0 0
    %1314 = vmatpush.bf16.msra.mxu0 0
    %1315 = vmatpush.bf16.msra.mxu0 %v1294
    %1316 = vmatpush.bf16.msra.mxu0 %v1293
    %1317 = vmatmul.bf16.gmra.mxu0 %v1298
    %v1318 = vpop.f32.mrf.mxu0
    %v1319 = vadd.f32 %v1283, %v1318
    %v1320 = vpop.f32.mrf.mxu0
    %v1321 = vadd.f32 %v1283, %v1320
    %1322 = vmatmul.bf16.gmra.mxu0 %v1301
    %v1323 = vpop.f32.mrf.mxu0
    %v1324 = vadd.f32 %v1283, %v1323
    %v1325 = vpop.f32.mrf.mxu0
    %v1326 = vadd.f32 %v1283, %v1325
    %1327 = vmatmul.bf16.gmra.mxu0 %v1304
    %v1328 = vpop.f32.mrf.mxu0
    %v1329 = vadd.f32 %v1283, %v1328
    %v1330 = vpop.f32.mrf.mxu0
    %v1331 = vadd.f32 %v1283, %v1330
    %1332 = vmatmul.bf16.gmra.mxu0 %v1307
    %v1333 = vpop.f32.mrf.mxu0
    %v1334 = vadd.f32 %v1283, %v1333
    %v1335 = vpop.f32.mrf.mxu0
    %v1336 = vadd.f32 %v1283, %v1335
    %1337 = vdwg.mxu0
    %v1338 = vmax.f32 %v1319, 0.0
    %v1339 = vmax.f32 %v1321, 0.0
    %v1340 = vmax.f32 %v1324, 0.0
    %v1341 = vmax.f32 %v1326, 0.0
    %v1342 = vmax.f32 %v1329, 0.0
    %v1343 = vmax.f32 %v1331, 0.0
    %v1344 = vmax.f32 %v1334, 0.0
    %v1345 = vmax.f32 %v1336, 0.0
    %v1346 = vtanh.pop %v1338
    %v1347 = vtanh.pop %v1339
    %v1348 = vtanh.pop %v1340
    %v1349 = vtanh.pop %v1341
    %v1350 = vtanh.pop %v1342
    %v1351 = vtanh.pop %v1343
    %v1352 = vtanh.pop %v1344
    %v1353 = vtanh.pop %v1345
    %v1354 = vmul.f32 %v1338, %v1346
    %v1355 = vmul.f32 %v1339, %v1347
    %v1356 = vmul.f32 %v1340, %v1348
    %v1357 = vmul.f32 %v1341, %v1349
    %v1358 = vmul.f32 %v1342, %v1350
    %v1359 = vmul.f32 %v1343, %v1351
    %v1360 = vmul.f32 %v1344, %v1352
    %v1361 = vmul.f32 %v1345, %v1353
    %v1362 = vld [vmem:[%s9] sm:$0xf]
    %v1363 = vld [vmem:[%s9 + $0x4] sm:$0xf]
    %v1364 = vld [vmem:[%s9 + $0x8] sm:$0xf]
    %v1365 = vld [vmem:[%s9 + $0xc] sm:$0xf]
    %v1366 = vpack.c.bf16 %v1354, %v1354
    %s1367 = scalar_lea.vmem %s9, 16
    %v1368 = vld [vmem:[%s1367] sm:$0xf]
    %v1369 = vld [vmem:[%s1367 + $0x4] sm:$0xf]
    %v1370 = vld [vmem:[%s1367 + $0x8] sm:$0xf]
    %v1371 = vld [vmem:[%s1367 + $0xc] sm:$0xf]
    %v1372 = vpack.c.bf16 %v1355, %v1355
    %v1377 = vunpack.c.l.b16 %v1368
    %v1378 = vunpack.c.l.b16 %v1369
    %v1379 = vunpack.c.l.b16 %v1370
    %v1380 = vunpack.c.l.b16 %v1371
    %v1381 = vpack.c.b16 %v1378, %v1377
    %v1382 = vpack.c.b16 %v1380, %v1379
    %v1386 = vsel %vm141, %v1372, 0
    %1388 = vmatpush.bf16.msra.mxu0 0
    %1389 = vmatpush.bf16.msra.mxu0 0
    %1390 = vmatpush.bf16.msra.mxu0 0
    %1391 = vmatpush.bf16.msra.mxu0 0
    %1392 = vmatpush.bf16.msra.mxu0 0
    %1393 = vmatpush.bf16.msra.mxu0 0
    %1394 = vmatpush.bf16.msra.mxu0 %v1382
    %1395 = vmatpush.bf16.msra.mxu0 %v1381
    %1396 = vmatmul.bf16.gmra.mxu0 %v1386
    %v1397 = vpop.f32.mrf.mxu0
    %v1398 = vadd.f32 0.0, %v1397
    %v1399 = vpop.f32.mrf.mxu0
    %1400 = vdwg.mxu0
    %v1405 = vunpack.c.l.b16 %v1362
    %v1406 = vunpack.c.l.b16 %v1363
    %v1407 = vunpack.c.l.b16 %v1364
    %v1408 = vunpack.c.l.b16 %v1365
    %v1409 = vpack.c.b16 %v1406, %v1405
    %v1410 = vpack.c.b16 %v1408, %v1407
    %v1414 = vsel %vm141, %v1366, 0
    %1416 = vmatpush.bf16.msra.mxu0 0
    %1417 = vmatpush.bf16.msra.mxu0 0
    %1418 = vmatpush.bf16.msra.mxu0 0
    %1419 = vmatpush.bf16.msra.mxu0 0
    %1420 = vmatpush.bf16.msra.mxu0 0
    %1421 = vmatpush.bf16.msra.mxu0 0
    %1422 = vmatpush.bf16.msra.mxu0 %v1410
    %1423 = vmatpush.bf16.msra.mxu0 %v1409
    %1424 = vmatmul.bf16.gmra.mxu0 %v1414
    %v1425 = vpop.f32.mrf.mxu0
    %v1426 = vadd.f32 %v1398, %v1425
    %v1427 = vpop.f32.mrf.mxu0
    %1428 = vdwg.mxu0
    %s1429 = scalar_lea.vmem %s9, 32
    %v1430 = vld [vmem:[%s1429] sm:$0xf]
    %v1431 = vld [vmem:[%s1429 + $0x4] sm:$0xf]
    %v1432 = vld [vmem:[%s1429 + $0x8] sm:$0xf]
    %v1433 = vld [vmem:[%s1429 + $0xc] sm:$0xf]
    %v1434 = vpack.c.bf16 %v1356, %v1356
    %v1439 = vunpack.c.l.b16 %v1430
    %v1440 = vunpack.c.l.b16 %v1431
    %v1441 = vunpack.c.l.b16 %v1432
    %v1442 = vunpack.c.l.b16 %v1433
    %v1443 = vpack.c.b16 %v1440, %v1439
    %v1444 = vpack.c.b16 %v1442, %v1441
    %v1448 = vsel %vm141, %v1434, 0
    %1450 = vmatpush.bf16.msra.mxu0 0
    %1451 = vmatpush.bf16.msra.mxu0 0
    %1452 = vmatpush.bf16.msra.mxu0 0
    %1453 = vmatpush.bf16.msra.mxu0 0
    %1454 = vmatpush.bf16.msra.mxu0 0
    %1455 = vmatpush.bf16.msra.mxu0 0
    %1456 = vmatpush.bf16.msra.mxu0 %v1444
    %1457 = vmatpush.bf16.msra.mxu0 %v1443
    %1458 = vmatmul.bf16.gmra.mxu0 %v1448
    %v1459 = vpop.f32.mrf.mxu0
    %v1460 = vadd.f32 0.0, %v1459
    %v1461 = vpop.f32.mrf.mxu0
    %1462 = vdwg.mxu0
    %v1463 = vadd.f32 %v1426, %v1460
    %s1464 = scalar_lea.vmem %s9, 48
    %v1465 = vld [vmem:[%s1464] sm:$0xf]
    %v1466 = vld [vmem:[%s1464 + $0x4] sm:$0xf]
    %v1467 = vld [vmem:[%s1464 + $0x8] sm:$0xf]
    %v1468 = vld [vmem:[%s1464 + $0xc] sm:$0xf]
    %v1469 = vpack.c.bf16 %v1357, %v1357
    %v1474 = vunpack.c.l.b16 %v1465
    %v1475 = vunpack.c.l.b16 %v1466
    %v1476 = vunpack.c.l.b16 %v1467
    %v1477 = vunpack.c.l.b16 %v1468
    %v1478 = vpack.c.b16 %v1475, %v1474
    %v1479 = vpack.c.b16 %v1477, %v1476
    %v1483 = vsel %vm141, %v1469, 0
    %1485 = vmatpush.bf16.msra.mxu0 0
    %1486 = vmatpush.bf16.msra.mxu0 0
    %1487 = vmatpush.bf16.msra.mxu0 0
    %1488 = vmatpush.bf16.msra.mxu0 0
    %1489 = vmatpush.bf16.msra.mxu0 0
    %1490 = vmatpush.bf16.msra.mxu0 0
    %1491 = vmatpush.bf16.msra.mxu0 %v1479
    %1492 = vmatpush.bf16.msra.mxu0 %v1478
    %1493 = vmatmul.bf16.gmra.mxu0 %v1483
    %v1494 = vpop.f32.mrf.mxu0
    %v1495 = vadd.f32 0.0, %v1494
    %v1496 = vpop.f32.mrf.mxu0
    %1497 = vdwg.mxu0
    %v1498 = vadd.f32 %v1463, %v1495
    %s1499 = scalar_lea.vmem %s9, 64
    %v1500 = vld [vmem:[%s1499] sm:$0xf]
    %v1501 = vld [vmem:[%s1499 + $0x4] sm:$0xf]
    %v1502 = vld [vmem:[%s1499 + $0x8] sm:$0xf]
    %v1503 = vld [vmem:[%s1499 + $0xc] sm:$0xf]
    %v1504 = vpack.c.bf16 %v1358, %v1358
    %v1509 = vunpack.c.l.b16 %v1500
    %v1510 = vunpack.c.l.b16 %v1501
    %v1511 = vunpack.c.l.b16 %v1502
    %v1512 = vunpack.c.l.b16 %v1503
    %v1513 = vpack.c.b16 %v1510, %v1509
    %v1514 = vpack.c.b16 %v1512, %v1511
    %v1518 = vsel %vm141, %v1504, 0
    %1520 = vmatpush.bf16.msra.mxu0 0
    %1521 = vmatpush.bf16.msra.mxu0 0
    %1522 = vmatpush.bf16.msra.mxu0 0
    %1523 = vmatpush.bf16.msra.mxu0 0
    %1524 = vmatpush.bf16.msra.mxu0 0
    %1525 = vmatpush.bf16.msra.mxu0 0
    %1526 = vmatpush.bf16.msra.mxu0 %v1514
    %1527 = vmatpush.bf16.msra.mxu0 %v1513
    %1528 = vmatmul.bf16.gmra.mxu0 %v1518
    %v1529 = vpop.f32.mrf.mxu0
    %v1530 = vadd.f32 0.0, %v1529
    %v1531 = vpop.f32.mrf.mxu0
    %1532 = vdwg.mxu0
    %v1533 = vadd.f32 %v1498, %v1530
    %s1534 = scalar_lea.vmem %s9, 80
    %v1535 = vld [vmem:[%s1534] sm:$0xf]
    %v1536 = vld [vmem:[%s1534 + $0x4] sm:$0xf]
    %v1537 = vld [vmem:[%s1534 + $0x8] sm:$0xf]
    %v1538 = vld [vmem:[%s1534 + $0xc] sm:$0xf]
    %v1539 = vpack.c.bf16 %v1359, %v1359
    %v1544 = vunpack.c.l.b16 %v1535
    %v1545 = vunpack.c.l.b16 %v1536
    %v1546 = vunpack.c.l.b16 %v1537
    %v1547 = vunpack.c.l.b16 %v1538
    %v1548 = vpack.c.b16 %v1545, %v1544
    %v1549 = vpack.c.b16 %v1547, %v1546
    %v1553 = vsel %vm141, %v1539, 0
    %1555 = vmatpush.bf16.msra.mxu0 0
    %1556 = vmatpush.bf16.msra.mxu0 0
    %1557 = vmatpush.bf16.msra.mxu0 0
    %1558 = vmatpush.bf16.msra.mxu0 0
    %1559 = vmatpush.bf16.msra.mxu0 0
    %1560 = vmatpush.bf16.msra.mxu0 0
    %1561 = vmatpush.bf16.msra.mxu0 %v1549
    %1562 = vmatpush.bf16.msra.mxu0 %v1548
    %1563 = vmatmul.bf16.gmra.mxu0 %v1553
    %v1564 = vpop.f32.mrf.mxu0
    %v1565 = vadd.f32 0.0, %v1564
    %v1566 = vpop.f32.mrf.mxu0
    %1567 = vdwg.mxu0
    %v1568 = vadd.f32 %v1533, %v1565
    %s1569 = scalar_lea.vmem %s9, 96
    %v1570 = vld [vmem:[%s1569] sm:$0xf]
    %v1571 = vld [vmem:[%s1569 + $0x4] sm:$0xf]
    %v1572 = vld [vmem:[%s1569 + $0x8] sm:$0xf]
    %v1573 = vld [vmem:[%s1569 + $0xc] sm:$0xf]
    %v1574 = vpack.c.bf16 %v1360, %v1360
    %v1579 = vunpack.c.l.b16 %v1570
    %v1580 = vunpack.c.l.b16 %v1571
    %v1581 = vunpack.c.l.b16 %v1572
    %v1582 = vunpack.c.l.b16 %v1573
    %v1583 = vpack.c.b16 %v1580, %v1579
    %v1584 = vpack.c.b16 %v1582, %v1581
    %v1588 = vsel %vm141, %v1574, 0
    %1590 = vmatpush.bf16.msra.mxu0 0
    %1591 = vmatpush.bf16.msra.mxu0 0
    %1592 = vmatpush.bf16.msra.mxu0 0
    %1593 = vmatpush.bf16.msra.mxu0 0
    %1594 = vmatpush.bf16.msra.mxu0 0
    %1595 = vmatpush.bf16.msra.mxu0 0
    %1596 = vmatpush.bf16.msra.mxu0 %v1584
    %1597 = vmatpush.bf16.msra.mxu0 %v1583
    %1598 = vmatmul.bf16.gmra.mxu0 %v1588
    %v1599 = vpop.f32.mrf.mxu0
    %v1600 = vadd.f32 0.0, %v1599
    %v1601 = vpop.f32.mrf.mxu0
    %1602 = vdwg.mxu0
    %v1603 = vadd.f32 %v1568, %v1600
    %s1604 = scalar_lea.vmem %s9, 112
    %v1605 = vld [vmem:[%s1604] sm:$0xf]
    %v1606 = vld [vmem:[%s1604 + $0x4] sm:$0xf]
    %v1607 = vld [vmem:[%s1604 + $0x8] sm:$0xf]
    %v1608 = vld [vmem:[%s1604 + $0xc] sm:$0xf]
    %v1609 = vpack.c.bf16 %v1361, %v1361
    %v1614 = vunpack.c.l.b16 %v1605
    %v1615 = vunpack.c.l.b16 %v1606
    %v1616 = vunpack.c.l.b16 %v1607
    %v1617 = vunpack.c.l.b16 %v1608
    %v1618 = vpack.c.b16 %v1615, %v1614
    %v1619 = vpack.c.b16 %v1617, %v1616
    %v1623 = vsel %vm141, %v1609, 0
    %1625 = vmatpush.bf16.msra.mxu0 0
    %1626 = vmatpush.bf16.msra.mxu0 0
    %1627 = vmatpush.bf16.msra.mxu0 0
    %1628 = vmatpush.bf16.msra.mxu0 0
    %1629 = vmatpush.bf16.msra.mxu0 0
    %1630 = vmatpush.bf16.msra.mxu0 0
    %1631 = vmatpush.bf16.msra.mxu0 %v1619
    %1632 = vmatpush.bf16.msra.mxu0 %v1618
    %1633 = vmatmul.bf16.gmra.mxu0 %v1623
    %v1634 = vpop.f32.mrf.mxu0
    %v1635 = vadd.f32 0.0, %v1634
    %v1636 = vpop.f32.mrf.mxu0
    %1637 = vdwg.mxu0
    %v1638 = vadd.f32 %v1603, %v1635
    %v1639 = vld [vmem:[%s10] sm:$0x1]
    %v1641 = vperm.slane %v1639, 0
    %v1643 = vadd.f32 %v1638, %v1641
    %vm1644 = vcmask 72704
    %1645 = vst.msk [vmem:[%s11] sm:$0xff] %vm1644, %v1643
    // Predicated region
    $region50: #{_lambda_.1} parent=1 // pred_check
      _
    $region51: #{_lambda_.1} parent=1 // pred_check_branch
      %1647 = sbr.rel (0) target = $region53
    $region52: #{_lambda_.1} parent=1 // pred_region
      _
    $region53: #{_lambda_.1} parent=1 // pred_fallthru
      _
    // Predicated region
    $region54: #{_lambda_.1} parent=1 // pred_check
      _
    $region55: #{_lambda_.1} parent=1 // pred_check_branch
      %1649 = sbr.rel (0) target = $region57
    $region56: #{_lambda_.1} parent=1 // pred_region
      _
    $region57: #{_lambda_.1} parent=1 // pred_fallthru
      _
    %1650 = vsyncpa [#allocation5], 1

</llo_original>
